<compile_context>
chip_gen: v5e
topology: v5e:2x2
jax: 0.10.0
libtpu: 0.0.40
codegen_flags: <defaults>
</compile_context>

<pallas_src>
from math import ceil

import numpy as np
import jax
import jax.numpy as jnp
from jax.experimental import pallas as pl
from jax.experimental.pallas import tpu as pltpu

SLOPE = 0.2   # leaky_relu_negative_slope
EPS = 1e-5    # InstanceNorm1d default eps


def _leaky(x):
    # equals LeakyReLU for 0 < SLOPE < 1; single vmax on the VPU
    return jnp.maximum(x, SLOPE * x)


def _dot_bf16(a, w_ref):
    """MXU matmul: bf16 inputs, f32 accumulation."""
    return jnp.dot(a.astype(jnp.bfloat16), w_ref[...],
                   preferred_element_type=jnp.float32)


def _inorm(h, m_ref, e_ref, g, b, inv_l):
    """InstanceNorm1d(affine) on channel-major flattened (B, sum_i C_i*L_i) activations.

    m_ref: (L_total, C_total) exact 0/1 bf16 segment-sum matrix (block-diag over encoders);
    e_ref: (C_total, L_total) exact 0/1 bf16 broadcast matrix;
    g, b, inv_l: (1, C_total) f32 affine params and per-segment 1/L factors.
    Sum and sum(x^2) share one stacked matmul; scale/shift share one stacked broadcast matmul.
    """
    bsz = h.shape[0]
    sums = jnp.dot(jnp.concatenate([h, h * h], axis=0).astype(jnp.bfloat16), m_ref[...],
                   preferred_element_type=jnp.float32)              # (2B, C)
    mean = sums[:bsz] * inv_l
    var = jnp.maximum(sums[bsz:] * inv_l - mean * mean, 0.0)        # clamp cancellation
    scale = jax.lax.rsqrt(var + EPS) * g                            # (B, C) f32
    shift = b - mean * scale                                        # (B, C) f32
    sb = jnp.dot(jnp.concatenate([scale, shift], axis=0).astype(jnp.bfloat16), e_ref[...],
                 preferred_element_type=jnp.float32)                # (2B, L)
    return h * sb[:bsz] + sb[bsz:]                                  # fused affine


# ----------------------------- fused Pallas kernel -----------------------------

def critic_kernel(sig_ref, aux_ref,
                  W1, W2, W3, M2, E2, M3, E3, WL, W1A, W1B, W2C, P,
                  out_ref):
    c2 = M2.shape[1]          # 32 (16 channels per encoder)
    c3 = M3.shape[1]          # 2  (1 channel per encoder)
    nl = WL.shape[1]          # 20 (10 latents per encoder)
    n1 = W1B.shape[1]         # 50
    n2 = W2C.shape[1]         # 20

    # unpack the packed f32 parameter block (static slices of one small VMEM operand)
    Pv = P[...]
    g2, b2, iL2 = Pv[0:1, :c2], Pv[1:2, :c2], Pv[2:3, :c2]
    g3, b3, iL3 = Pv[3:4, :c3], Pv[4:5, :c3], Pv[5:6, :c3]
    bl = Pv[6:7, :nl]
    b1, b2c = Pv[7:8, :n1], Pv[8:9, :n2]
    w3t, b3c = Pv[9:10, :n2], Pv[10:11, :1]

    # classifier head contribution of [rf | bunch_length]: depends only on the inputs,
    # so it sits entirely off the dependent encoder->classifier MXU chain.
    head = _dot_bf16(aux_ref[...], W1A) + b1                        # (B, 50)

    # fused encoders (both at once via block-diagonal weights)
    h = _leaky(_dot_bf16(sig_ref[...], W1))                         # Conv1(1->8)   (B, 8*L1t)
    h = _dot_bf16(h, W2)                                            # Conv2(8->16)  (B, 16*L2t)
    h = _leaky(_inorm(h, M2, E2, g2, b2, iL2))                      # InstanceNorm(16)
    h = _dot_bf16(h, W3)                                            # Conv3(16->1)  (B, L3t)
    h = _leaky(_inorm(h, M3, E3, g3, b3, iL3))                      # InstanceNorm(1)
    enc = _leaky(_dot_bf16(h, WL) + bl)                             # Linear        (B, 20)=[ef|ec]

    # classifier
    z = _leaky(_dot_bf16(enc, W1B) + head)                          # Linear(26,50)
    z = _leaky(_dot_bf16(z, W2C) + b2c)                             # Linear(50,20)
    # Linear(20,1) as broadcast-multiply + lane reduction (avoids an N=1 matmul)
    out_ref[...] = jnp.sum(z * w3t, axis=-1, keepdims=True) + b3c


# ----------------------------- pallas_call wrapper -----------------------------

_KP_ORDER = ("W1", "W2", "W3", "M2", "E2", "M3", "E3", "WL", "W1A", "W1B", "W2C", "P")


def critic_forward(rf, ff, cur, blen, kp):
    B = rf.shape[0]
    # bf16 MXU rows pack 16 per sublane group; 8 rows suffice for tiny batches.
    Bp = 8 if B <= 8 else 16 * ceil(B / 16)

    sig = jnp.concatenate([ff, cur], axis=1)        # (B, N_ff + N_cur)
    aux = jnp.concatenate([rf, blen], axis=1)       # (B, num_rf + 1)

    def pad(x):
        return x if Bp == B else jnp.pad(x, ((0, Bp - B), (0, 0)))

    operands = (pad(sig), pad(aux), *(kp[k] for k in _KP_ORDER))
    vmem = pl.BlockSpec(memory_space=pltpu.MemorySpace.VMEM)
    out = pl.pallas_call(
        critic_kernel,
        out_shape=jax.ShapeDtypeStruct((Bp, 1), jnp.float32),
        in_specs=[vmem] * len(operands),
        out_specs=vmem,
    )(*operands)
    return out[:B]


# ----------------------------- host-side glue (param setup) -----------------------------

def _snap_bf16(x):
    """Round params to bf16-representable values so the f32 reference uses identical weights."""
    return jnp.asarray(x, jnp.float32).astype(jnp.bfloat16).astype(jnp.float32)


def conv1d_banded_matrix(w, l_in, stride=2, pad=1):
    """Dense matrix M s.t. flatten_channel_major(conv1d(x, w)) == flatten(x) @ M."""
    w = np.asarray(w, np.float32)
    c_out, c_in, k = w.shape
    l_out = (l_in + 2 * pad - k) // stride + 1
    big = np.zeros((c_in * l_in, c_out * l_out), np.float32)
    for co in range(c_out):
        for ci in range(c_in):
            for l in range(l_out):
                for kk in range(k):
                    j = stride * l + kk - pad
                    if 0 <= j < l_in:
                        big[ci * l_in + j, co * l_out + l] = w[co, ci, kk]
    return big


def _block_diag(a, b):
    a = np.asarray(a, np.float32)
    b = np.asarray(b, np.float32)
    out = np.zeros((a.shape[0] + b.shape[0], a.shape[1] + b.shape[1]), np.float32)
    out[:a.shape[0], :a.shape[1]] = a
    out[a.shape[0]:, a.shape[1]:] = b
    return out


def init_encoder(key, signal_dims, latent_dims):
    """Reference (f32, bf16-representable) parameters of one ConvolutionalEncoder."""
    C1, C2, C3, K = 8, 16, 1, 3
    L3 = ceil(signal_dims / 8)
    ks = jax.random.split(key, 9)
    return dict(
        w1=_snap_bf16(0.40 * jax.random.normal(ks[0], (C1, 1, K), jnp.float32)),
        w2=_snap_bf16(0.25 * jax.random.normal(ks[1], (C2, C1, K), jnp.float32)),
        w3=_snap_bf16(0.25 * jax.random.normal(ks[2], (C3, C2, K), jnp.float32)),
        g2=1.0 + 0.1 * jax.random.normal(ks[3], (C2,), jnp.float32),
        b2=0.1 * jax.random.normal(ks[4], (C2,), jnp.float32),
        g3=1.0 + 0.1 * jax.random.normal(ks[5], (C3,), jnp.float32),
        b3=0.1 * jax.random.normal(ks[6], (C3,), jnp.float32),
        wl=_snap_bf16(0.30 * jax.random.normal(ks[7], (L3, latent_dims), jnp.float32)),
        bl=0.10 * jax.random.normal(ks[8], (latent_dims,), jnp.float32),
    )


def init_classifier(key, in_dims):
    ks = jax.random.split(key, 6)
    return dict(
        w1=_snap_bf16(0.30 * jax.random.normal(ks[0], (in_dims, 50), jnp.float32)),
        b1=0.10 * jax.random.normal(ks[1], (50,), jnp.float32),
        w2=_snap_bf16(0.30 * jax.random.normal(ks[2], (50, 20), jnp.float32)),
        b2=0.10 * jax.random.normal(ks[3], (20,), jnp.float32),
        w3=0.30 * jax.random.normal(ks[4], (20, 1), jnp.float32),
        b3=0.10 * jax.random.normal(ks[5], (1,), jnp.float32),
    )


def build_kernel_params(ff_p, cur_p, cls_p, n_ff, n_cur, num_rf):
    """Build fused (block-diagonal) kernel operands from the two encoders + classifier."""
    def enc_mats(p, L0):
        L1, L2, L3 = ceil(L0 / 2), ceil(L0 / 4), ceil(L0 / 8)
        return dict(
            W1=conv1d_banded_matrix(p["w1"], L0),                          # (L0,    8*L1)
            W2=conv1d_banded_matrix(p["w2"], L1),                          # (8*L1, 16*L2)
            W3=conv1d_banded_matrix(p["w3"], L2),                          # (16*L2,   L3)
            M2=np.kron(np.eye(16, dtype=np.float32), np.ones((L2, 1), np.float32)),
            E2=np.kron(np.eye(16, dtype=np.float32), np.ones((1, L2), np.float32)),
            M3=np.ones((L3, 1), np.float32),
            E3=np.ones((1, L3), np.float32),
            WL=np.asarray(p["wl"], np.float32),
            L2=L2, L3=L3,
        )

    mf = enc_mats(ff_p, n_ff)
    mc = enc_mats(cur_p, n_cur)
    bf16 = lambda x: jnp.asarray(x, jnp.bfloat16)

    kp = dict(
        W1=bf16(_block_diag(mf["W1"], mc["W1"])),
        W2=bf16(_block_diag(mf["W2"], mc["W2"])),
        W3=bf16(_block_diag(mf["W3"], mc["W3"])),
        M2=bf16(_block_diag(mf["M2"], mc["M2"])),   # exact 0/1 in bf16
        E2=bf16(_block_diag(mf["E2"], mc["E2"])),
        M3=bf16(_block_diag(mf["M3"], mc["M3"])),
        E3=bf16(_block_diag(mf["E3"], mc["E3"])),
        WL=bf16(_block_diag(mf["WL"], mc["WL"])),
    )

    # classifier: reference input order is [rf(5), ef(10), ec(10), blen(1)];
    # kernel computes aux=[rf|blen] @ W1A  +  enc=[ef|ec] @ W1B.
    w1 = np.asarray(cls_p["w1"], np.float32)
    lat = mf["WL"].shape[1] + mc["WL"].shape[1]
    kp["W1A"] = bf16(np.concatenate([w1[:num_rf], w1[num_rf + lat:]], axis=0))   # (6, 50)
    kp["W1B"] = bf16(w1[num_rf:num_rf + lat])                                    # (20, 50)
    kp["W2C"] = bf16(cls_p["w2"])

    # pack all tiny f32 params into one (16, 64) array; row layout documented in the kernel
    rows = [
        np.concatenate([np.asarray(ff_p["g2"]), np.asarray(cur_p["g2"])]),          # 0 g2_all
        np.concatenate([np.asarray(ff_p["b2"]), np.asarray(cur_p["b2"])]),          # 1 b2_all
        np.concatenate([np.full(16, 1.0 / mf["L2"], np.float32),
                        np.full(16, 1.0 / mc["L2"], np.float32)]),                  # 2 invL2
        np.concatenate([np.asarray(ff_p["g3"]), np.asarray(cur_p["g3"])]),          # 3 g3_all
        np.concatenate([np.asarray(ff_p["b3"]), np.asarray(cur_p["b3"])]),          # 4 b3_all
        np.array([1.0 / mf["L3"], 1.0 / mc["L3"]], np.float32),                     # 5 invL3
        np.concatenate([np.asarray(ff_p["bl"]), np.asarray(cur_p["bl"])]),          # 6 bl_all
        np.asarray(cls_p["b1"]),                                                    # 7 b1
        np.asarray(cls_p["b2"]),                                                    # 8 b2
        np.asarray(cls_p["w3"]).reshape(-1),                                        # 9 w3^T
        np.asarray(cls_p["b3"]),                                                    # 10 b3
    ]
    packed = np.zeros((16, 64), np.float32)
    for i, r in enumerate(rows):
        r = np.asarray(r, np.float32).reshape(-1)
        packed[i, :r.size] = r
    kp["P"] = jnp.asarray(packed)
    return kp


# ----------------------------- pure-JAX reference -----------------------------

def _conv1d_ref(x, w):
    return jax.lax.conv_general_dilated(
        x, w, window_strides=(2,), padding=[(1, 1)],
        dimension_numbers=("NCH", "OIH", "NCH"))


def _instance_norm_ref(x, g, b):
    m = x.mean(axis=-1, keepdims=True)
    v = ((x - m) ** 2).mean(axis=-1, keepdims=True)
    return (x - m) * jax.lax.rsqrt(v + EPS) * g[None, :, None] + b[None, :, None]


def _encoder_ref(signal, p):
    x = signal[:, None, :]
    x = _leaky(_conv1d_ref(x, p["w1"]))
    x = _leaky(_instance_norm_ref(_conv1d_ref(x, p["w2"]), p["g2"], p["b2"]))
    x = _leaky(_instance_norm_ref(_conv1d_ref(x, p["w3"]), p["g3"], p["b3"]))
    x = x.reshape(x.shape[0], -1)
    return _leaky(jnp.dot(x, p["wl"]) + p["bl"])


def _critic_ref(rf, ff, cur, blen, ff_p, cur_p, cls_p):
    enc_cur = _encoder_ref(cur, cur_p)
    enc_ff = _encoder_ref(ff, ff_p)
    x = jnp.concatenate([rf, enc_ff, enc_cur, blen], axis=1)
    h = _leaky(jnp.dot(x, cls_p["w1"]) + cls_p["b1"])
    h = _leaky(jnp.dot(h, cls_p["w2"]) + cls_p["b2"])
    return jnp.dot(h, cls_p["w3"]) + cls_p["b3"]


# ----------------------------- main -----------------------------

if __name__ == "__main__":
    B = 2
    NUM_RF = 5
    N_FF = 64      # num_formfactor_samples (small, exercises the full 3-conv stack)
    N_CUR = 96     # num_current_samples
    ENC_FF = 10
    ENC_CUR = 10

    root = jax.random.PRNGKey(0)
    k_ff, k_cur, k_cls, k_in = jax.random.split(root, 4)
    ff_p = init_encoder(k_ff, N_FF, ENC_FF)
    cur_p = init_encoder(k_cur, N_CUR, ENC_CUR)
    cls_p = init_classifier(k_cls, NUM_RF + ENC_FF + ENC_CUR + 1)
    kp = build_kernel_params(ff_p, cur_p, cls_p, N_FF, N_CUR, NUM_RF)

    ki = jax.random.split(k_in, 4)
    rf_settings = jax.random.normal(ki[0], (B, NUM_RF), jnp.float32)
    formfactor = jax.random.normal(ki[1], (B, N_FF), jnp.float32)
    current_profile = jax.random.normal(ki[2], (B, N_CUR), jnp.float32)
    bunch_length = jax.random.normal(ki[3], (B, 1), jnp.float32)

    # Fused Pallas forward pass (both encoders + classifier in one kernel).
    out = critic_forward(rf_settings, formfactor, current_profile, bunch_length, kp)
    out = jax.block_until_ready(out)

    # Correctness check against a pure-JAX f32 reference (same bf16-representable weights);
    # tolerance accommodates bf16 activation casts on the MXU path.
    with jax.default_matmul_precision("highest"):
        ref = _critic_ref(rf_settings, formfactor, current_profile, bunch_length,
                          ff_p, cur_p, cls_p)
    ref = jax.block_until_ready(ref)

    assert out.shape == (B, 1)
    np.testing.assert_allclose(np.asarray(out), np.asarray(ref), rtol=2e-2, atol=2e-2)
    print("KERNEL_OK")
</pallas_src>

<mosaic_0001>
module attributes {stable_mosaic.version = 11 : i64} {
  func.func @critic_kernel(%arg0: memref<8x160xf32, #tpu.memory_space<vmem>>, %arg1: memref<8x6xf32, #tpu.memory_space<vmem>>, %arg2: memref<160x640xbf16, #tpu.memory_space<vmem>>, %arg3: memref<640x640xbf16, #tpu.memory_space<vmem>>, %arg4: memref<640x20xbf16, #tpu.memory_space<vmem>>, %arg5: memref<640x32xbf16, #tpu.memory_space<vmem>>, %arg6: memref<32x640xbf16, #tpu.memory_space<vmem>>, %arg7: memref<20x2xbf16, #tpu.memory_space<vmem>>, %arg8: memref<2x20xbf16, #tpu.memory_space<vmem>>, %arg9: memref<20x20xbf16, #tpu.memory_space<vmem>>, %arg10: memref<6x50xbf16, #tpu.memory_space<vmem>>, %arg11: memref<20x50xbf16, #tpu.memory_space<vmem>>, %arg12: memref<50x20xbf16, #tpu.memory_space<vmem>>, %arg13: memref<16x64xf32, #tpu.memory_space<vmem>>, %arg14: memref<8x1xf32, #tpu.memory_space<vmem>>) attributes {dimension_semantics = [], scalar_prefetch = 0 : i64, scratch_operands = 0 : i64, tpu.core_type = #tpu.core_type<tc>} {
    %c0 = arith.constant 0 : index
    %c0_0 = arith.constant 0 : index
    %0 = vector.load %arg13[%c0, %c0_0] : memref<16x64xf32, #tpu.memory_space<vmem>>, vector<16x64xf32>
    %1 = vector.extract_strided_slice %0 {offsets = [0, 0], sizes = [1, 32], strides = [1, 1]} : vector<16x64xf32> to vector<1x32xf32>
    %2 = vector.extract_strided_slice %0 {offsets = [1, 0], sizes = [1, 32], strides = [1, 1]} : vector<16x64xf32> to vector<1x32xf32>
    %3 = vector.extract_strided_slice %0 {offsets = [2, 0], sizes = [1, 32], strides = [1, 1]} : vector<16x64xf32> to vector<1x32xf32>
    %4 = vector.extract_strided_slice %0 {offsets = [3, 0], sizes = [1, 2], strides = [1, 1]} : vector<16x64xf32> to vector<1x2xf32>
    %5 = vector.extract_strided_slice %0 {offsets = [4, 0], sizes = [1, 2], strides = [1, 1]} : vector<16x64xf32> to vector<1x2xf32>
    %6 = vector.extract_strided_slice %0 {offsets = [5, 0], sizes = [1, 2], strides = [1, 1]} : vector<16x64xf32> to vector<1x2xf32>
    %7 = vector.extract_strided_slice %0 {offsets = [6, 0], sizes = [1, 20], strides = [1, 1]} : vector<16x64xf32> to vector<1x20xf32>
    %8 = vector.extract_strided_slice %0 {offsets = [7, 0], sizes = [1, 50], strides = [1, 1]} : vector<16x64xf32> to vector<1x50xf32>
    %9 = vector.extract_strided_slice %0 {offsets = [8, 0], sizes = [1, 20], strides = [1, 1]} : vector<16x64xf32> to vector<1x20xf32>
    %10 = vector.extract_strided_slice %0 {offsets = [9, 0], sizes = [1, 20], strides = [1, 1]} : vector<16x64xf32> to vector<1x20xf32>
    %11 = vector.extract_strided_slice %0 {offsets = [10, 0], sizes = [1, 1], strides = [1, 1]} : vector<16x64xf32> to vector<1x1xf32>
    %c0_1 = arith.constant 0 : index
    %c0_2 = arith.constant 0 : index
    %12 = vector.load %arg1[%c0_1, %c0_2] : memref<8x6xf32, #tpu.memory_space<vmem>>, vector<8x6xf32>
    %13 = arith.truncf %12 : vector<8x6xf32> to vector<8x6xbf16>
    %c0_3 = arith.constant 0 : index
    %c0_4 = arith.constant 0 : index
    %14 = vector.load %arg10[%c0_3, %c0_4] : memref<6x50xbf16, #tpu.memory_space<vmem>>, vector<6x50xbf16>
    %cst = arith.constant dense<0.000000e+00> : vector<8x50xf32>
    %15 = tpu.matmul %13, %14, %cst {dimension_numbers = #tpu.dot_dimension_numbers<[1], [0], [0], [1], [0, 0, 1, 1], [], []>} : vector<8x6xbf16>, vector<6x50xbf16>, vector<8x50xf32> -> vector<8x50xf32>
    %16 = vector.broadcast %8 : vector<1x50xf32> to vector<8x50xf32>
    %17 = arith.addf %15, %16 : vector<8x50xf32>
    %c0_5 = arith.constant 0 : index
    %c0_6 = arith.constant 0 : index
    %18 = vector.load %arg0[%c0_5, %c0_6] : memref<8x160xf32, #tpu.memory_space<vmem>>, vector<8x160xf32>
    %19 = arith.truncf %18 : vector<8x160xf32> to vector<8x160xbf16>
    %c0_7 = arith.constant 0 : index
    %c0_8 = arith.constant 0 : index
    %20 = vector.load %arg2[%c0_7, %c0_8] : memref<160x640xbf16, #tpu.memory_space<vmem>>, vector<160x640xbf16>
    %cst_9 = arith.constant dense<0.000000e+00> : vector<8x640xf32>
    %21 = tpu.matmul %19, %20, %cst_9 {dimension_numbers = #tpu.dot_dimension_numbers<[1], [0], [0], [1], [0, 0, 1, 1], [], []>} : vector<8x160xbf16>, vector<160x640xbf16>, vector<8x640xf32> -> vector<8x640xf32>
    %cst_10 = arith.constant 2.000000e-01 : f32
    %22 = vector.broadcast %cst_10 : f32 to vector<8x640xf32>
    %23 = arith.mulf %22, %21 : vector<8x640xf32>
    %24 = arith.maximumf %21, %23 : vector<8x640xf32>
    %25 = arith.truncf %24 : vector<8x640xf32> to vector<8x640xbf16>
    %c0_11 = arith.constant 0 : index
    %c0_12 = arith.constant 0 : index
    %26 = vector.load %arg3[%c0_11, %c0_12] : memref<640x640xbf16, #tpu.memory_space<vmem>>, vector<640x640xbf16>
    %cst_13 = arith.constant dense<0.000000e+00> : vector<8x640xf32>
    %27 = tpu.matmul %25, %26, %cst_13 {dimension_numbers = #tpu.dot_dimension_numbers<[1], [0], [0], [1], [0, 0, 1, 1], [], []>} : vector<8x640xbf16>, vector<640x640xbf16>, vector<8x640xf32> -> vector<8x640xf32>
    %28 = arith.mulf %27, %27 : vector<8x640xf32>
    %29 = tpu.concatenate %27, %28 in 0 : vector<8x640xf32>, vector<8x640xf32> -> vector<16x640xf32>
    %30 = arith.truncf %29 : vector<16x640xf32> to vector<16x640xbf16>
    %c0_14 = arith.constant 0 : index
    %c0_15 = arith.constant 0 : index
    %31 = vector.load %arg5[%c0_14, %c0_15] : memref<640x32xbf16, #tpu.memory_space<vmem>>, vector<640x32xbf16>
    %cst_16 = arith.constant dense<0.000000e+00> : vector<16x32xf32>
    %32 = tpu.matmul %30, %31, %cst_16 {dimension_numbers = #tpu.dot_dimension_numbers<[1], [0], [0], [1], [0, 0, 1, 1], [], []>} : vector<16x640xbf16>, vector<640x32xbf16>, vector<16x32xf32> -> vector<16x32xf32>
    %33 = vector.extract_strided_slice %32 {offsets = [0, 0], sizes = [8, 32], strides = [1, 1]} : vector<16x32xf32> to vector<8x32xf32>
    %34 = vector.broadcast %3 : vector<1x32xf32> to vector<8x32xf32>
    %35 = arith.mulf %33, %34 : vector<8x32xf32>
    %36 = vector.extract_strided_slice %32 {offsets = [8, 0], sizes = [8, 32], strides = [1, 1]} : vector<16x32xf32> to vector<8x32xf32>
    %37 = vector.broadcast %3 : vector<1x32xf32> to vector<8x32xf32>
    %38 = arith.mulf %36, %37 : vector<8x32xf32>
    %39 = arith.mulf %35, %35 : vector<8x32xf32>
    %40 = arith.subf %38, %39 : vector<8x32xf32>
    %cst_17 = arith.constant 0.000000e+00 : f32
    %41 = vector.broadcast %cst_17 : f32 to vector<8x32xf32>
    %42 = arith.maximumf %40, %41 : vector<8x32xf32>
    %cst_18 = arith.constant 9.99999974E-6 : f32
    %43 = vector.broadcast %cst_18 : f32 to vector<8x32xf32>
    %44 = arith.addf %42, %43 : vector<8x32xf32>
    %45 = math.rsqrt %44 : vector<8x32xf32>
    %46 = vector.broadcast %1 : vector<1x32xf32> to vector<8x32xf32>
    %47 = arith.mulf %45, %46 : vector<8x32xf32>
    %48 = arith.mulf %35, %47 : vector<8x32xf32>
    %49 = vector.broadcast %2 : vector<1x32xf32> to vector<8x32xf32>
    %50 = arith.subf %49, %48 : vector<8x32xf32>
    %51 = tpu.concatenate %47, %50 in 0 : vector<8x32xf32>, vector<8x32xf32> -> vector<16x32xf32>
    %52 = arith.truncf %51 : vector<16x32xf32> to vector<16x32xbf16>
    %c0_19 = arith.constant 0 : index
    %c0_20 = arith.constant 0 : index
    %53 = vector.load %arg6[%c0_19, %c0_20] : memref<32x640xbf16, #tpu.memory_space<vmem>>, vector<32x640xbf16>
    %cst_21 = arith.constant dense<0.000000e+00> : vector<16x640xf32>
    %54 = tpu.matmul %52, %53, %cst_21 {dimension_numbers = #tpu.dot_dimension_numbers<[1], [0], [0], [1], [0, 0, 1, 1], [], []>} : vector<16x32xbf16>, vector<32x640xbf16>, vector<16x640xf32> -> vector<16x640xf32>
    %55 = vector.extract_strided_slice %54 {offsets = [0, 0], sizes = [8, 640], strides = [1, 1]} : vector<16x640xf32> to vector<8x640xf32>
    %56 = arith.mulf %27, %55 : vector<8x640xf32>
    %57 = vector.extract_strided_slice %54 {offsets = [8, 0], sizes = [8, 640], strides = [1, 1]} : vector<16x640xf32> to vector<8x640xf32>
    %58 = arith.addf %56, %57 : vector<8x640xf32>
    %cst_22 = arith.constant 2.000000e-01 : f32
    %59 = vector.broadcast %cst_22 : f32 to vector<8x640xf32>
    %60 = arith.mulf %59, %58 : vector<8x640xf32>
    %61 = arith.maximumf %58, %60 : vector<8x640xf32>
    %62 = arith.truncf %61 : vector<8x640xf32> to vector<8x640xbf16>
    %c0_23 = arith.constant 0 : index
    %c0_24 = arith.constant 0 : index
    %63 = vector.load %arg4[%c0_23, %c0_24] : memref<640x20xbf16, #tpu.memory_space<vmem>>, vector<640x20xbf16>
    %cst_25 = arith.constant dense<0.000000e+00> : vector<8x20xf32>
    %64 = tpu.matmul %62, %63, %cst_25 {dimension_numbers = #tpu.dot_dimension_numbers<[1], [0], [0], [1], [0, 0, 1, 1], [], []>} : vector<8x640xbf16>, vector<640x20xbf16>, vector<8x20xf32> -> vector<8x20xf32>
    %65 = arith.mulf %64, %64 : vector<8x20xf32>
    %66 = tpu.concatenate %64, %65 in 0 : vector<8x20xf32>, vector<8x20xf32> -> vector<16x20xf32>
    %67 = arith.truncf %66 : vector<16x20xf32> to vector<16x20xbf16>
    %c0_26 = arith.constant 0 : index
    %c0_27 = arith.constant 0 : index
    %68 = vector.load %arg7[%c0_26, %c0_27] : memref<20x2xbf16, #tpu.memory_space<vmem>>, vector<20x2xbf16>
    %cst_28 = arith.constant dense<0.000000e+00> : vector<16x2xf32>
    %69 = tpu.matmul %67, %68, %cst_28 {dimension_numbers = #tpu.dot_dimension_numbers<[1], [0], [0], [1], [0, 0, 1, 1], [], []>} : vector<16x20xbf16>, vector<20x2xbf16>, vector<16x2xf32> -> vector<16x2xf32>
    %70 = vector.extract_strided_slice %69 {offsets = [0, 0], sizes = [8, 2], strides = [1, 1]} : vector<16x2xf32> to vector<8x2xf32>
    %71 = vector.broadcast %6 : vector<1x2xf32> to vector<8x2xf32>
    %72 = arith.mulf %70, %71 : vector<8x2xf32>
    %73 = vector.extract_strided_slice %69 {offsets = [8, 0], sizes = [8, 2], strides = [1, 1]} : vector<16x2xf32> to vector<8x2xf32>
    %74 = vector.broadcast %6 : vector<1x2xf32> to vector<8x2xf32>
    %75 = arith.mulf %73, %74 : vector<8x2xf32>
    %76 = arith.mulf %72, %72 : vector<8x2xf32>
    %77 = arith.subf %75, %76 : vector<8x2xf32>
    %cst_29 = arith.constant 0.000000e+00 : f32
    %78 = vector.broadcast %cst_29 : f32 to vector<8x2xf32>
    %79 = arith.maximumf %77, %78 : vector<8x2xf32>
    %cst_30 = arith.constant 9.99999974E-6 : f32
    %80 = vector.broadcast %cst_30 : f32 to vector<8x2xf32>
    %81 = arith.addf %79, %80 : vector<8x2xf32>
    %82 = math.rsqrt %81 : vector<8x2xf32>
    %83 = vector.broadcast %4 : vector<1x2xf32> to vector<8x2xf32>
    %84 = arith.mulf %82, %83 : vector<8x2xf32>
    %85 = arith.mulf %72, %84 : vector<8x2xf32>
    %86 = vector.broadcast %5 : vector<1x2xf32> to vector<8x2xf32>
    %87 = arith.subf %86, %85 : vector<8x2xf32>
    %88 = tpu.concatenate %84, %87 in 0 : vector<8x2xf32>, vector<8x2xf32> -> vector<16x2xf32>
    %89 = arith.truncf %88 : vector<16x2xf32> to vector<16x2xbf16>
    %c0_31 = arith.constant 0 : index
    %c0_32 = arith.constant 0 : index
    %90 = vector.load %arg8[%c0_31, %c0_32] : memref<2x20xbf16, #tpu.memory_space<vmem>>, vector<2x20xbf16>
    %cst_33 = arith.constant dense<0.000000e+00> : vector<16x20xf32>
    %91 = tpu.matmul %89, %90, %cst_33 {dimension_numbers = #tpu.dot_dimension_numbers<[1], [0], [0], [1], [0, 0, 1, 1], [], []>} : vector<16x2xbf16>, vector<2x20xbf16>, vector<16x20xf32> -> vector<16x20xf32>
    %92 = vector.extract_strided_slice %91 {offsets = [0, 0], sizes = [8, 20], strides = [1, 1]} : vector<16x20xf32> to vector<8x20xf32>
    %93 = arith.mulf %64, %92 : vector<8x20xf32>
    %94 = vector.extract_strided_slice %91 {offsets = [8, 0], sizes = [8, 20], strides = [1, 1]} : vector<16x20xf32> to vector<8x20xf32>
    %95 = arith.addf %93, %94 : vector<8x20xf32>
    %cst_34 = arith.constant 2.000000e-01 : f32
    %96 = vector.broadcast %cst_34 : f32 to vector<8x20xf32>
    %97 = arith.mulf %96, %95 : vector<8x20xf32>
    %98 = arith.maximumf %95, %97 : vector<8x20xf32>
    %99 = arith.truncf %98 : vector<8x20xf32> to vector<8x20xbf16>
    %c0_35 = arith.constant 0 : index
    %c0_36 = arith.constant 0 : index
    %100 = vector.load %arg9[%c0_35, %c0_36] : memref<20x20xbf16, #tpu.memory_space<vmem>>, vector<20x20xbf16>
    %cst_37 = arith.constant dense<0.000000e+00> : vector<8x20xf32>
    %101 = tpu.matmul %99, %100, %cst_37 {dimension_numbers = #tpu.dot_dimension_numbers<[1], [0], [0], [1], [0, 0, 1, 1], [], []>} : vector<8x20xbf16>, vector<20x20xbf16>, vector<8x20xf32> -> vector<8x20xf32>
    %102 = vector.broadcast %7 : vector<1x20xf32> to vector<8x20xf32>
    %103 = arith.addf %101, %102 : vector<8x20xf32>
    %cst_38 = arith.constant 2.000000e-01 : f32
    %104 = vector.broadcast %cst_38 : f32 to vector<8x20xf32>
    %105 = arith.mulf %104, %103 : vector<8x20xf32>
    %106 = arith.maximumf %103, %105 : vector<8x20xf32>
    %107 = arith.truncf %106 : vector<8x20xf32> to vector<8x20xbf16>
    %c0_39 = arith.constant 0 : index
    %c0_40 = arith.constant 0 : index
    %108 = vector.load %arg11[%c0_39, %c0_40] : memref<20x50xbf16, #tpu.memory_space<vmem>>, vector<20x50xbf16>
    %cst_41 = arith.constant dense<0.000000e+00> : vector<8x50xf32>
    %109 = tpu.matmul %107, %108, %cst_41 {dimension_numbers = #tpu.dot_dimension_numbers<[1], [0], [0], [1], [0, 0, 1, 1], [], []>} : vector<8x20xbf16>, vector<20x50xbf16>, vector<8x50xf32> -> vector<8x50xf32>
    %110 = arith.addf %109, %17 : vector<8x50xf32>
    %cst_42 = arith.constant 2.000000e-01 : f32
    %111 = vector.broadcast %cst_42 : f32 to vector<8x50xf32>
    %112 = arith.mulf %111, %110 : vector<8x50xf32>
    %113 = arith.maximumf %110, %112 : vector<8x50xf32>
    %114 = arith.truncf %113 : vector<8x50xf32> to vector<8x50xbf16>
    %c0_43 = arith.constant 0 : index
    %c0_44 = arith.constant 0 : index
    %115 = vector.load %arg12[%c0_43, %c0_44] : memref<50x20xbf16, #tpu.memory_space<vmem>>, vector<50x20xbf16>
    %cst_45 = arith.constant dense<0.000000e+00> : vector<8x20xf32>
    %116 = tpu.matmul %114, %115, %cst_45 {dimension_numbers = #tpu.dot_dimension_numbers<[1], [0], [0], [1], [0, 0, 1, 1], [], []>} : vector<8x50xbf16>, vector<50x20xbf16>, vector<8x20xf32> -> vector<8x20xf32>
    %117 = vector.broadcast %9 : vector<1x20xf32> to vector<8x20xf32>
    %118 = arith.addf %116, %117 : vector<8x20xf32>
    %cst_46 = arith.constant 2.000000e-01 : f32
    %119 = vector.broadcast %cst_46 : f32 to vector<8x20xf32>
    %120 = arith.mulf %119, %118 : vector<8x20xf32>
    %121 = arith.maximumf %118, %120 : vector<8x20xf32>
    %122 = vector.broadcast %10 : vector<1x20xf32> to vector<8x20xf32>
    %123 = arith.mulf %121, %122 : vector<8x20xf32>
    %cst_47 = arith.constant dense<0.000000e+00> : vector<8xf32>
    %124 = vector.multi_reduction <add>, %123, %cst_47 [1] : vector<8x20xf32> to vector<8xf32>
    %125 = vector.shape_cast %124 : vector<8xf32> to vector<8x1xf32>
    %126 = vector.broadcast %11 : vector<1x1xf32> to vector<8x1xf32>
    %127 = arith.addf %125, %126 : vector<8x1xf32>
    %c0_48 = arith.constant 0 : index
    %c0_49 = arith.constant 0 : index
    %128 = vector.load %arg14[%c0_48, %c0_49] : memref<8x1xf32, #tpu.memory_space<vmem>>, vector<8x1xf32>
    tpu.vector_store %arg14[%c0_48, %c0_49], %127 {strides = array<i32>} : memref<8x1xf32, #tpu.memory_space<vmem>>, vector<8x1xf32>,
    return
  }
}

</mosaic_0001>

<llo_original>
// kernel: tpu_custom_call.1
$region0: #{tpu_custom_call.1}
  #allocation0 [shape = 'u32[]', space=smem, size = 0x4, offset = 0x4, fixed_abs, tag = 'smem constant byte address 0x4 - core index']
  #allocation1 [shape = 'u32[72,128]{1,0:T(1,128)}', space=vmem, size = 0x9000, scoped, tag = 'internal scratch']
  %s0 = inlined_call_operand.vmem [shape: f32[8,160], index: 0, kind: input, shape index: {}]
  %s1 = inlined_call_operand.vmem [shape: f32[8,6], index: 1, kind: input, shape index: {}]
  %s2 = inlined_call_operand.vmem [shape: bf16[160,640], index: 2, kind: input, shape index: {}]
  %s3 = inlined_call_operand.hbm [shape: bf16[640,640], index: 3, kind: input, shape index: {}]
  %s4 = inlined_call_operand.vmem [shape: bf16[640,20], index: 4, kind: input, shape index: {}]
  %s5 = inlined_call_operand.vmem [shape: bf16[640,32], index: 5, kind: input, shape index: {}]
  %s6 = inlined_call_operand.vmem [shape: bf16[32,640], index: 6, kind: input, shape index: {}]
  %s7 = inlined_call_operand.vmem [shape: bf16[20,2], index: 7, kind: input, shape index: {}]
  %s8 = inlined_call_operand.vmem [shape: bf16[2,20], index: 8, kind: input, shape index: {}]
  %s9 = inlined_call_operand.vmem [shape: bf16[20,20], index: 9, kind: input, shape index: {}]
  %s10 = inlined_call_operand.vmem [shape: bf16[6,50], index: 10, kind: input, shape index: {}]
  %s11 = inlined_call_operand.vmem [shape: bf16[20,50], index: 11, kind: input, shape index: {}]
  %s12 = inlined_call_operand.vmem [shape: bf16[50,20], index: 12, kind: input, shape index: {}]
  %s13 = inlined_call_operand.vmem [shape: f32[16,64], index: 13, kind: input, shape index: {}]
  %s14 = inlined_call_operand.vmem [shape: f32[8,1], index: 14, kind: output, shape index: {}]
  %s15 = sld [smem:[#allocation0]]
  $region70: #{tpu_custom_call.1} parent=0
    _
  %s17 = ssub.s32 1, %s15
  %s18 = scalar_select 0, %s17, %s15
  $region1: #{tpu_custom_call.1} parent=0
    #allocation2 [shape = 'u8[819200]{0}', space=vmem, size = 0xc8000, scoped, tag = 'input window, operand 3, single buffered']
    #allocation3 [shape = 's32[1]{0}', space=sflag, size = 0x4, scoped, tag = 'scoped memory for tpu_custom_call.1']
    %19 = vsyncpa [#allocation3], 0
    // Predicated region
    $region2: #{tpu_custom_call.1} parent=1 // pred_check
      _
    $region3: #{tpu_custom_call.1} parent=1 // pred_check_branch
      %21 = sbr.rel (0) target = $region5
    $region4: #{tpu_custom_call.1} parent=1 // pred_region
      _
    $region5: #{tpu_custom_call.1} parent=1 // pred_fallthru
      _
    // Predicated region
    $region6: #{tpu_custom_call.1} parent=1 // pred_check
      _
    $region7: #{tpu_custom_call.1} parent=1 // pred_check_branch
      %23 = sbr.rel (0) target = $region9
    $region8: #{tpu_custom_call.1} parent=1 // pred_region
      _
    $region9: #{tpu_custom_call.1} parent=1 // pred_fallthru
      _
    // Predicated region
    $region10: #{tpu_custom_call.1} parent=1 // pred_check
      _
    $region11: #{tpu_custom_call.1} parent=1 // pred_check_branch
      %25 = sbr.rel (0) target = $region13
    $region12: #{tpu_custom_call.1} parent=1 // pred_region
      _
    $region13: #{tpu_custom_call.1} parent=1 // pred_fallthru
      _
    // Predicated region
    $region14: #{tpu_custom_call.1} parent=1 // pred_check
      _
    $region15: #{tpu_custom_call.1} parent=1 // pred_check_branch
      %27 = sbr.rel (0) target = $region17
    $region16: #{tpu_custom_call.1} parent=1 // pred_region
      %29 = vsyncadd [#allocation3], 0
      %s30 = sshll.u32 %s3, 4
      %s31 = int_to_ptr.hbm [resolvable:$true] %s30
      %s32 = sshll.u32 [#allocation2], 4
      %s33 = int_to_ptr.vmem [resolvable:$true] %s32
      %38 = dma.hbm_to_vmem [thread:$0]  %s31, 25600, %s33, [#allocation3], 320, 320, 20
    $region17: #{tpu_custom_call.1} parent=1 // pred_fallthru
      _
    // Predicated region
    $region18: #{tpu_custom_call.1} parent=1 // pred_check
      _
    $region19: #{tpu_custom_call.1} parent=1 // pred_check_branch
      %40 = sbr.rel (0) target = $region21
    $region20: #{tpu_custom_call.1} parent=1 // pred_region
      _
    $region21: #{tpu_custom_call.1} parent=1 // pred_fallthru
      _
    // Predicated region
    $region22: #{tpu_custom_call.1} parent=1 // pred_check
      _
    $region23: #{tpu_custom_call.1} parent=1 // pred_check_branch
      %42 = sbr.rel (0) target = $region25
    $region24: #{tpu_custom_call.1} parent=1 // pred_region
      _
    $region25: #{tpu_custom_call.1} parent=1 // pred_fallthru
      _
    // Predicated region
    $region26: #{tpu_custom_call.1} parent=1 // pred_check
      _
    $region27: #{tpu_custom_call.1} parent=1 // pred_check_branch
      %44 = sbr.rel (0) target = $region29
    $region28: #{tpu_custom_call.1} parent=1 // pred_region
      _
    $region29: #{tpu_custom_call.1} parent=1 // pred_fallthru
      _
    // Predicated region
    $region30: #{tpu_custom_call.1} parent=1 // pred_check
      _
    $region31: #{tpu_custom_call.1} parent=1 // pred_check_branch
      %46 = sbr.rel (0) target = $region33
    $region32: #{tpu_custom_call.1} parent=1 // pred_region
      _
    $region33: #{tpu_custom_call.1} parent=1 // pred_fallthru
      _
    // Predicated region
    $region34: #{tpu_custom_call.1} parent=1 // pred_check
      _
    $region35: #{tpu_custom_call.1} parent=1 // pred_check_branch
      %48 = sbr.rel (0) target = $region37
    $region36: #{tpu_custom_call.1} parent=1 // pred_region
      _
    $region37: #{tpu_custom_call.1} parent=1 // pred_fallthru
      _
    // Predicated region
    $region38: #{tpu_custom_call.1} parent=1 // pred_check
      _
    $region39: #{tpu_custom_call.1} parent=1 // pred_check_branch
      %50 = sbr.rel (0) target = $region41
    $region40: #{tpu_custom_call.1} parent=1 // pred_region
      _
    $region41: #{tpu_custom_call.1} parent=1 // pred_fallthru
      _
    // Predicated region
    $region42: #{tpu_custom_call.1} parent=1 // pred_check
      _
    $region43: #{tpu_custom_call.1} parent=1 // pred_check_branch
      %52 = sbr.rel (0) target = $region45
    $region44: #{tpu_custom_call.1} parent=1 // pred_region
      _
    $region45: #{tpu_custom_call.1} parent=1 // pred_fallthru
      _
    // Predicated region
    $region46: #{tpu_custom_call.1} parent=1 // pred_check
      _
    $region47: #{tpu_custom_call.1} parent=1 // pred_check_branch
      %54 = sbr.rel (0) target = $region49
    $region48: #{tpu_custom_call.1} parent=1 // pred_region
      _
    $region49: #{tpu_custom_call.1} parent=1 // pred_fallthru
      _
    // Predicated region
    $region50: #{tpu_custom_call.1} parent=1 // pred_check
      _
    $region51: #{tpu_custom_call.1} parent=1 // pred_check_branch
      %56 = sbr.rel (0) target = $region53
    $region52: #{tpu_custom_call.1} parent=1 // pred_region
      _
    $region53: #{tpu_custom_call.1} parent=1 // pred_fallthru
      _
    // Predicated region
    $region54: #{tpu_custom_call.1} parent=1 // pred_check
      _
    $region55: #{tpu_custom_call.1} parent=1 // pred_check_branch
      %58 = sbr.rel (0) target = $region57
    $region56: #{tpu_custom_call.1} parent=1 // pred_region
      _
    $region57: #{tpu_custom_call.1} parent=1 // pred_fallthru
      _
    // Predicated region
    $region58: #{tpu_custom_call.1} parent=1 // pred_check
      _
    $region59: #{tpu_custom_call.1} parent=1 // pred_check_branch
      %60 = sbr.rel (0) target = $region61
    $region60: #{tpu_custom_call.1} parent=1 // pred_region
      %62 = dma.done [#allocation3], 25600
    $region61: #{tpu_custom_call.1} parent=1 // pred_fallthru
      _
    %v64 = vld [vmem:[%s13] sm:$0xff]
    %v65 = vld [vmem:[%s13 + $0x8] sm:$0xff]
    %v66 = vld [vmem:[%s1] sm:$0xff]
    %v67 = vpack.c.bf16 %v66, %v66
    %v68 = vld [vmem:[%s10] sm:$0x7]
    %v69 = vperm.slane %v64, 7
    %vm70 = vcmask 48128
    %v72 = vsel %vm70, %v67, 0
    %vm74 = vcmask 1042432
    %v76 = vsel %vm74, %v68, 0
    %78 = vmatpush.bf16.msra.mxu0 0
    %79 = vmatpush.bf16.msra.mxu0 0
    %80 = vmatpush.bf16.msra.mxu0 0
    %81 = vmatpush.bf16.msra.mxu0 0
    %82 = vmatpush.bf16.msra.mxu0 0
    %83 = vmatpush.bf16.msra.mxu0 0
    %84 = vmatpush.bf16.msra.mxu0 0
    %85 = vmatpush.bf16.msra.mxu0 %v76
    %86 = vmatmul.bf16.gmra.mxu0 %v72
    %v87 = vpop.f32.mrf.mxu0
    %v88 = vadd.f32 %v69, %v87
    %v89 = vpop.f32.mrf.mxu0
    %90 = vdwg.mxu0
    %v91 = vld [vmem:[%s0] sm:$0xff]
    %v92 = vld [vmem:[%s0 + $0x8] sm:$0xff]
    %v93 = vpack.c.bf16 %v91, %v91
    %v94 = vpack.c.bf16 %v92, %v92
    %v95 = vld [vmem:[%s2] sm:$0xff]
    %v96 = vld [vmem:[%s2 + $0x8] sm:$0xff]
    %v97 = vld [vmem:[%s2 + $0x10] sm:$0xf]
    %v98 = vld [vmem:[%s2 + $0x14] sm:$0xff]
    %v99 = vld [vmem:[%s2 + $0x1c] sm:$0xff]
    %v100 = vld [vmem:[%s2 + $0x24] sm:$0xf]
    %v101 = vld [vmem:[%s2 + $0x28] sm:$0xff]
    %v102 = vld [vmem:[%s2 + $0x30] sm:$0xff]
    %v103 = vld [vmem:[%s2 + $0x38] sm:$0xf]
    %v104 = vld [vmem:[%s2 + $0x3c] sm:$0xff]
    %v105 = vld [vmem:[%s2 + $0x44] sm:$0xff]
    %v106 = vld [vmem:[%s2 + $0x4c] sm:$0xf]
    %v107 = vld [vmem:[%s2 + $0x50] sm:$0xff]
    %v108 = vld [vmem:[%s2 + $0x58] sm:$0xff]
    %v109 = vld [vmem:[%s2 + $0x60] sm:$0xf]
    %v110 = vld [vmem:[%s2 + $0x64] sm:$0xff]
    %v111 = vld [vmem:[%s2 + $0x6c] sm:$0xff]
    %v112 = vld [vmem:[%s2 + $0x74] sm:$0xf]
    %v113 = vld [vmem:[%s2 + $0x78] sm:$0xff]
    %v114 = vld [vmem:[%s2 + $0x80] sm:$0xff]
    %v115 = vld [vmem:[%s2 + $0x88] sm:$0xf]
    %v116 = vld [vmem:[%s2 + $0x8c] sm:$0xff]
    %v117 = vld [vmem:[%s2 + $0x94] sm:$0xff]
    %v118 = vld [vmem:[%s2 + $0x9c] sm:$0xf]
    %v119 = vld [vmem:[%s2 + $0xa0] sm:$0xff]
    %v120 = vld [vmem:[%s2 + $0xa8] sm:$0xff]
    %v121 = vld [vmem:[%s2 + $0xb0] sm:$0xf]
    %v122 = vld [vmem:[%s2 + $0xb4] sm:$0xff]
    %v123 = vld [vmem:[%s2 + $0xbc] sm:$0xff]
    %v124 = vld [vmem:[%s2 + $0xc4] sm:$0xf]
    %v125 = vld [vmem:[%s2 + $0xc8] sm:$0xff]
    %v126 = vld [vmem:[%s2 + $0xd0] sm:$0xff]
    %v127 = vld [vmem:[%s2 + $0xd8] sm:$0xf]
    %v128 = vld [vmem:[%s2 + $0xdc] sm:$0xff]
    %v129 = vld [vmem:[%s2 + $0xe4] sm:$0xff]
    %v130 = vld [vmem:[%s2 + $0xec] sm:$0xf]
    %v131 = vld [vmem:[%s2 + $0xf0] sm:$0xff]
    %v132 = vld [vmem:[%s2 + $0xf8] sm:$0xff]
    %v133 = vld [vmem:[%s2 + $0x100] sm:$0xf]
    %v134 = vld [vmem:[%s2 + $0x104] sm:$0xff]
    %v135 = vld [vmem:[%s2 + $0x10c] sm:$0xff]
    %v136 = vld [vmem:[%s2 + $0x114] sm:$0xf]
    %v137 = vld [vmem:[%s2 + $0x118] sm:$0xff]
    %v138 = vld [vmem:[%s2 + $0x120] sm:$0xff]
    %v139 = vld [vmem:[%s2 + $0x128] sm:$0xf]
    %v140 = vld [vmem:[%s2 + $0x12c] sm:$0xff]
    %v141 = vld [vmem:[%s2 + $0x134] sm:$0xff]
    %v142 = vld [vmem:[%s2 + $0x13c] sm:$0xf]
    %v143 = vld [vmem:[%s2 + $0x140] sm:$0xff]
    %v144 = vld [vmem:[%s2 + $0x148] sm:$0xff]
    %v145 = vld [vmem:[%s2 + $0x150] sm:$0xf]
    %v146 = vld [vmem:[%s2 + $0x154] sm:$0xff]
    %v147 = vld [vmem:[%s2 + $0x15c] sm:$0xff]
    %v148 = vld [vmem:[%s2 + $0x164] sm:$0xf]
    %v149 = vld [vmem:[%s2 + $0x168] sm:$0xff]
    %v150 = vld [vmem:[%s2 + $0x170] sm:$0xff]
    %v151 = vld [vmem:[%s2 + $0x178] sm:$0xf]
    %v152 = vld [vmem:[%s2 + $0x17c] sm:$0xff]
    %v153 = vld [vmem:[%s2 + $0x184] sm:$0xff]
    %v154 = vld [vmem:[%s2 + $0x18c] sm:$0xf]
    %v215 = vunpack.c.l.b16 %v95
    %v216 = vunpack.c.h.b16 %v95
    %v217 = vunpack.c.l.b16 %v96
    %v218 = vunpack.c.h.b16 %v96
    %v219 = vunpack.c.l.b16 %v97
    %v220 = vunpack.c.l.b16 %v98
    %v221 = vunpack.c.h.b16 %v98
    %v222 = vunpack.c.l.b16 %v99
    %v223 = vunpack.c.h.b16 %v99
    %v224 = vunpack.c.l.b16 %v100
    %v225 = vunpack.c.l.b16 %v101
    %v226 = vunpack.c.h.b16 %v101
    %v227 = vunpack.c.l.b16 %v102
    %v228 = vunpack.c.h.b16 %v102
    %v229 = vunpack.c.l.b16 %v103
    %v230 = vunpack.c.l.b16 %v104
    %v231 = vunpack.c.h.b16 %v104
    %v232 = vunpack.c.l.b16 %v105
    %v233 = vunpack.c.h.b16 %v105
    %v234 = vunpack.c.l.b16 %v106
    %v235 = vunpack.c.l.b16 %v107
    %v236 = vunpack.c.h.b16 %v107
    %v237 = vunpack.c.l.b16 %v108
    %v238 = vunpack.c.h.b16 %v108
    %v239 = vunpack.c.l.b16 %v109
    %v240 = vunpack.c.l.b16 %v110
    %v241 = vunpack.c.h.b16 %v110
    %v242 = vunpack.c.l.b16 %v111
    %v243 = vunpack.c.h.b16 %v111
    %v244 = vunpack.c.l.b16 %v112
    %v245 = vunpack.c.l.b16 %v113
    %v246 = vunpack.c.h.b16 %v113
    %v247 = vunpack.c.l.b16 %v114
    %v248 = vunpack.c.h.b16 %v114
    %v249 = vunpack.c.l.b16 %v115
    %v250 = vunpack.c.l.b16 %v116
    %v251 = vunpack.c.h.b16 %v116
    %v252 = vunpack.c.l.b16 %v117
    %v253 = vunpack.c.h.b16 %v117
    %v254 = vunpack.c.l.b16 %v118
    %v255 = vunpack.c.l.b16 %v119
    %v256 = vunpack.c.h.b16 %v119
    %v257 = vunpack.c.l.b16 %v120
    %v258 = vunpack.c.h.b16 %v120
    %v259 = vunpack.c.l.b16 %v121
    %v260 = vunpack.c.l.b16 %v122
    %v261 = vunpack.c.h.b16 %v122
    %v262 = vunpack.c.l.b16 %v123
    %v263 = vunpack.c.h.b16 %v123
    %v264 = vunpack.c.l.b16 %v124
    %v265 = vunpack.c.l.b16 %v125
    %v266 = vunpack.c.h.b16 %v125
    %v267 = vunpack.c.l.b16 %v126
    %v268 = vunpack.c.h.b16 %v126
    %v269 = vunpack.c.l.b16 %v127
    %v270 = vunpack.c.l.b16 %v128
    %v271 = vunpack.c.h.b16 %v128
    %v272 = vunpack.c.l.b16 %v129
    %v273 = vunpack.c.h.b16 %v129
    %v274 = vunpack.c.l.b16 %v130
    %v275 = vunpack.c.l.b16 %v131
    %v276 = vunpack.c.h.b16 %v131
    %v277 = vunpack.c.l.b16 %v132
    %v278 = vunpack.c.h.b16 %v132
    %v279 = vunpack.c.l.b16 %v133
    %v280 = vunpack.c.l.b16 %v134
    %v281 = vunpack.c.h.b16 %v134
    %v282 = vunpack.c.l.b16 %v135
    %v283 = vunpack.c.h.b16 %v135
    %v284 = vunpack.c.l.b16 %v136
    %v285 = vunpack.c.l.b16 %v137
    %v286 = vunpack.c.h.b16 %v137
    %v287 = vunpack.c.l.b16 %v138
    %v288 = vunpack.c.h.b16 %v138
    %v289 = vunpack.c.l.b16 %v139
    %v290 = vunpack.c.l.b16 %v140
    %v291 = vunpack.c.h.b16 %v140
    %v292 = vunpack.c.l.b16 %v141
    %v293 = vunpack.c.h.b16 %v141
    %v294 = vunpack.c.l.b16 %v142
    %v295 = vunpack.c.l.b16 %v143
    %v296 = vunpack.c.h.b16 %v143
    %v297 = vunpack.c.l.b16 %v144
    %v298 = vunpack.c.h.b16 %v144
    %v299 = vunpack.c.l.b16 %v145
    %v300 = vunpack.c.l.b16 %v146
    %v301 = vunpack.c.h.b16 %v146
    %v302 = vunpack.c.l.b16 %v147
    %v303 = vunpack.c.h.b16 %v147
    %v304 = vunpack.c.l.b16 %v148
    %v305 = vunpack.c.l.b16 %v149
    %v306 = vunpack.c.h.b16 %v149
    %v307 = vunpack.c.l.b16 %v150
    %v308 = vunpack.c.h.b16 %v150
    %v309 = vunpack.c.l.b16 %v151
    %v310 = vunpack.c.l.b16 %v152
    %v311 = vunpack.c.h.b16 %v152
    %v312 = vunpack.c.l.b16 %v153
    %v313 = vunpack.c.h.b16 %v153
    %v314 = vunpack.c.l.b16 %v154
    %v315 = vpack.c.b16 %v220, %v215
    %v316 = vpack.c.b16 %v221, %v216
    %v317 = vpack.c.b16 %v222, %v217
    %v318 = vpack.c.b16 %v223, %v218
    %v319 = vpack.c.b16 %v224, %v219
    %v320 = vpack.c.b16 %v230, %v225
    %v321 = vpack.c.b16 %v231, %v226
    %v322 = vpack.c.b16 %v232, %v227
    %v323 = vpack.c.b16 %v233, %v228
    %v324 = vpack.c.b16 %v234, %v229
    %v325 = vpack.c.b16 %v240, %v235
    %v326 = vpack.c.b16 %v241, %v236
    %v327 = vpack.c.b16 %v242, %v237
    %v328 = vpack.c.b16 %v243, %v238
    %v329 = vpack.c.b16 %v244, %v239
    %v330 = vpack.c.b16 %v250, %v245
    %v331 = vpack.c.b16 %v251, %v246
    %v332 = vpack.c.b16 %v252, %v247
    %v333 = vpack.c.b16 %v253, %v248
    %v334 = vpack.c.b16 %v254, %v249
    %v335 = vpack.c.b16 %v260, %v255
    %v336 = vpack.c.b16 %v261, %v256
    %v337 = vpack.c.b16 %v262, %v257
    %v338 = vpack.c.b16 %v263, %v258
    %v339 = vpack.c.b16 %v264, %v259
    %v340 = vpack.c.b16 %v270, %v265
    %v341 = vpack.c.b16 %v271, %v266
    %v342 = vpack.c.b16 %v272, %v267
    %v343 = vpack.c.b16 %v273, %v268
    %v344 = vpack.c.b16 %v274, %v269
    %v345 = vpack.c.b16 %v280, %v275
    %v346 = vpack.c.b16 %v281, %v276
    %v347 = vpack.c.b16 %v282, %v277
    %v348 = vpack.c.b16 %v283, %v278
    %v349 = vpack.c.b16 %v284, %v279
    %v350 = vpack.c.b16 %v290, %v285
    %v351 = vpack.c.b16 %v291, %v286
    %v352 = vpack.c.b16 %v292, %v287
    %v353 = vpack.c.b16 %v293, %v288
    %v354 = vpack.c.b16 %v294, %v289
    %v355 = vpack.c.b16 %v300, %v295
    %v356 = vpack.c.b16 %v301, %v296
    %v357 = vpack.c.b16 %v302, %v297
    %v358 = vpack.c.b16 %v303, %v298
    %v359 = vpack.c.b16 %v304, %v299
    %v360 = vpack.c.b16 %v310, %v305
    %v361 = vpack.c.b16 %v311, %v306
    %v362 = vpack.c.b16 %v312, %v307
    %v363 = vpack.c.b16 %v313, %v308
    %v364 = vpack.c.b16 %v314, %v309
    %vm415 = vcmask 261120
    %v417 = vsel %vm415, %v94, 0
    %419 = vmatpush.bf16.msra.mxu0 %v350
    %420 = vmatpush.bf16.msra.mxu0 %v345
    %421 = vmatpush.bf16.msra.mxu0 %v340
    %422 = vmatpush.bf16.msra.mxu0 %v335
    %423 = vmatpush.bf16.msra.mxu0 %v330
    %424 = vmatpush.bf16.msra.mxu0 %v325
    %425 = vmatpush.bf16.msra.mxu0 %v320
    %426 = vmatpush.bf16.msra.mxu0 %v315
    %427 = vmatmul.bf16.gmra.mxu0 %v93
    %v428 = vpop.f32.mrf.mxu0
    %v429 = vadd.f32 0.0, %v428
    %v430 = vpop.f32.mrf.mxu0
    %431 = vdwg.mxu0
    %432 = vmatpush.bf16.msra.mxu0 0
    %433 = vmatpush.bf16.msra.mxu0 0
    %434 = vmatpush.bf16.msra.mxu0 0
    %435 = vmatpush.bf16.msra.mxu0 0
    %436 = vmatpush.bf16.msra.mxu0 0
    %437 = vmatpush.bf16.msra.mxu0 0
    %438 = vmatpush.bf16.msra.mxu0 %v360
    %439 = vmatpush.bf16.msra.mxu0 %v355
    %440 = vmatmul.bf16.gmra.mxu0 %v417
    %v441 = vpop.f32.mrf.mxu0
    %v442 = vadd.f32 %v429, %v441
    %v443 = vpop.f32.mrf.mxu0
    %444 = vdwg.mxu0
    %445 = vmatpush.bf16.msra.mxu0 %v351
    %446 = vmatpush.bf16.msra.mxu0 %v346
    %447 = vmatpush.bf16.msra.mxu0 %v341
    %448 = vmatpush.bf16.msra.mxu0 %v336
    %449 = vmatpush.bf16.msra.mxu0 %v331
    %450 = vmatpush.bf16.msra.mxu0 %v326
    %451 = vmatpush.bf16.msra.mxu0 %v321
    %452 = vmatpush.bf16.msra.mxu0 %v316
    %453 = vmatmul.bf16.gmra.mxu0 %v93
    %v454 = vpop.f32.mrf.mxu0
    %v455 = vadd.f32 0.0, %v454
    %v456 = vpop.f32.mrf.mxu0
    %457 = vdwg.mxu0
    %458 = vmatpush.bf16.msra.mxu0 0
    %459 = vmatpush.bf16.msra.mxu0 0
    %460 = vmatpush.bf16.msra.mxu0 0
    %461 = vmatpush.bf16.msra.mxu0 0
    %462 = vmatpush.bf16.msra.mxu0 0
    %463 = vmatpush.bf16.msra.mxu0 0
    %464 = vmatpush.bf16.msra.mxu0 %v361
    %465 = vmatpush.bf16.msra.mxu0 %v356
    %466 = vmatmul.bf16.gmra.mxu0 %v417
    %v467 = vpop.f32.mrf.mxu0
    %v468 = vadd.f32 %v455, %v467
    %v469 = vpop.f32.mrf.mxu0
    %470 = vdwg.mxu0
    %471 = vmatpush.bf16.msra.mxu0 %v352
    %472 = vmatpush.bf16.msra.mxu0 %v347
    %473 = vmatpush.bf16.msra.mxu0 %v342
    %474 = vmatpush.bf16.msra.mxu0 %v337
    %475 = vmatpush.bf16.msra.mxu0 %v332
    %476 = vmatpush.bf16.msra.mxu0 %v327
    %477 = vmatpush.bf16.msra.mxu0 %v322
    %478 = vmatpush.bf16.msra.mxu0 %v317
    %479 = vmatmul.bf16.gmra.mxu0 %v93
    %v480 = vpop.f32.mrf.mxu0
    %v481 = vadd.f32 0.0, %v480
    %v482 = vpop.f32.mrf.mxu0
    %483 = vdwg.mxu0
    %484 = vmatpush.bf16.msra.mxu0 0
    %485 = vmatpush.bf16.msra.mxu0 0
    %486 = vmatpush.bf16.msra.mxu0 0
    %487 = vmatpush.bf16.msra.mxu0 0
    %488 = vmatpush.bf16.msra.mxu0 0
    %489 = vmatpush.bf16.msra.mxu0 0
    %490 = vmatpush.bf16.msra.mxu0 %v362
    %491 = vmatpush.bf16.msra.mxu0 %v357
    %492 = vmatmul.bf16.gmra.mxu0 %v417
    %v493 = vpop.f32.mrf.mxu0
    %v494 = vadd.f32 %v481, %v493
    %v495 = vpop.f32.mrf.mxu0
    %496 = vdwg.mxu0
    %497 = vmatpush.bf16.msra.mxu0 %v353
    %498 = vmatpush.bf16.msra.mxu0 %v348
    %499 = vmatpush.bf16.msra.mxu0 %v343
    %500 = vmatpush.bf16.msra.mxu0 %v338
    %501 = vmatpush.bf16.msra.mxu0 %v333
    %502 = vmatpush.bf16.msra.mxu0 %v328
    %503 = vmatpush.bf16.msra.mxu0 %v323
    %504 = vmatpush.bf16.msra.mxu0 %v318
    %505 = vmatmul.bf16.gmra.mxu0 %v93
    %v506 = vpop.f32.mrf.mxu0
    %v507 = vadd.f32 0.0, %v506
    %v508 = vpop.f32.mrf.mxu0
    %509 = vdwg.mxu0
    %510 = vmatpush.bf16.msra.mxu0 0
    %511 = vmatpush.bf16.msra.mxu0 0
    %512 = vmatpush.bf16.msra.mxu0 0
    %513 = vmatpush.bf16.msra.mxu0 0
    %514 = vmatpush.bf16.msra.mxu0 0
    %515 = vmatpush.bf16.msra.mxu0 0
    %516 = vmatpush.bf16.msra.mxu0 %v363
    %517 = vmatpush.bf16.msra.mxu0 %v358
    %518 = vmatmul.bf16.gmra.mxu0 %v417
    %v519 = vpop.f32.mrf.mxu0
    %v520 = vadd.f32 %v507, %v519
    %v521 = vpop.f32.mrf.mxu0
    %522 = vdwg.mxu0
    %523 = vmatpush.bf16.msra.mxu0 %v354
    %524 = vmatpush.bf16.msra.mxu0 %v349
    %525 = vmatpush.bf16.msra.mxu0 %v344
    %526 = vmatpush.bf16.msra.mxu0 %v339
    %527 = vmatpush.bf16.msra.mxu0 %v334
    %528 = vmatpush.bf16.msra.mxu0 %v329
    %529 = vmatpush.bf16.msra.mxu0 %v324
    %530 = vmatpush.bf16.msra.mxu0 %v319
    %531 = vmatmul.bf16.gmra.mxu0 %v93
    %v532 = vpop.f32.mrf.mxu0
    %v533 = vadd.f32 0.0, %v532
    %v534 = vpop.f32.mrf.mxu0
    %535 = vdwg.mxu0
    %536 = vmatpush.bf16.msra.mxu0 0
    %537 = vmatpush.bf16.msra.mxu0 0
    %538 = vmatpush.bf16.msra.mxu0 0
    %539 = vmatpush.bf16.msra.mxu0 0
    %540 = vmatpush.bf16.msra.mxu0 0
    %541 = vmatpush.bf16.msra.mxu0 0
    %542 = vmatpush.bf16.msra.mxu0 %v364
    %543 = vmatpush.bf16.msra.mxu0 %v359
    %544 = vmatmul.bf16.gmra.mxu0 %v417
    %v545 = vpop.f32.mrf.mxu0
    %v546 = vadd.f32 %v533, %v545
    %v547 = vpop.f32.mrf.mxu0
    %548 = vdwg.mxu0
    %v549 = vmul.f32 %v442, 0.2
    %v550 = vmul.f32 %v468, 0.2
    %v551 = vmul.f32 %v494, 0.2
    %v552 = vmul.f32 %v520, 0.2
    %v553 = vmul.f32 %v546, 0.2
    %v554 = vmax.f32 %v442, %v549
    %v555 = vmax.f32 %v468, %v550
    %v556 = vmax.f32 %v494, %v551
    %v557 = vmax.f32 %v520, %v552
    %v558 = vmax.f32 %v546, %v553
    %v559 = vpack.c.bf16 %v554, %v554
    %v560 = vpack.c.bf16 %v555, %v555
    %v561 = vpack.c.bf16 %v556, %v556
    %v562 = vpack.c.bf16 %v557, %v557
    %v563 = vpack.c.bf16 %v558, %v558
    %v564 = vld [vmem:[#allocation2] sm:$0xff]
    %v565 = vld [vmem:[#allocation2 + $0x8] sm:$0xff]
    %v566 = vld [vmem:[#allocation2 + $0x10] sm:$0xf]
    %v567 = vld [vmem:[#allocation2 + $0x14] sm:$0xff]
    %v568 = vld [vmem:[#allocation2 + $0x1c] sm:$0xff]
    %v569 = vld [vmem:[#allocation2 + $0x24] sm:$0xf]
    %v570 = vld [vmem:[#allocation2 + $0x28] sm:$0xff]
    %v571 = vld [vmem:[#allocation2 + $0x30] sm:$0xff]
    %v572 = vld [vmem:[#allocation2 + $0x38] sm:$0xf]
    %v573 = vld [vmem:[#allocation2 + $0x3c] sm:$0xff]
    %v574 = vld [vmem:[#allocation2 + $0x44] sm:$0xff]
    %v575 = vld [vmem:[#allocation2 + $0x4c] sm:$0xf]
    %v576 = vld [vmem:[#allocation2 + $0x50] sm:$0xff]
    %v577 = vld [vmem:[#allocation2 + $0x58] sm:$0xff]
    %v578 = vld [vmem:[#allocation2 + $0x60] sm:$0xf]
    %v579 = vld [vmem:[#allocation2 + $0x64] sm:$0xff]
    %v580 = vld [vmem:[#allocation2 + $0x6c] sm:$0xff]
    %v581 = vld [vmem:[#allocation2 + $0x74] sm:$0xf]
    %v582 = vld [vmem:[#allocation2 + $0x78] sm:$0xff]
    %v583 = vld [vmem:[#allocation2 + $0x80] sm:$0xff]
    %v584 = vld [vmem:[#allocation2 + $0x88] sm:$0xf]
    %v585 = vld [vmem:[#allocation2 + $0x8c] sm:$0xff]
    %v586 = vld [vmem:[#allocation2 + $0x94] sm:$0xff]
    %v587 = vld [vmem:[#allocation2 + $0x9c] sm:$0xf]
    %v588 = vld [vmem:[#allocation2 + $0xa0] sm:$0xff]
    %v589 = vld [vmem:[#allocation2 + $0xa8] sm:$0xff]
    %v590 = vld [vmem:[#allocation2 + $0xb0] sm:$0xf]
    %v591 = vld [vmem:[#allocation2 + $0xb4] sm:$0xff]
    %v592 = vld [vmem:[#allocation2 + $0xbc] sm:$0xff]
    %v593 = vld [vmem:[#allocation2 + $0xc4] sm:$0xf]
    %v594 = vld [vmem:[#allocation2 + $0xc8] sm:$0xff]
    %v595 = vld [vmem:[#allocation2 + $0xd0] sm:$0xff]
    %v596 = vld [vmem:[#allocation2 + $0xd8] sm:$0xf]
    %v597 = vld [vmem:[#allocation2 + $0xdc] sm:$0xff]
    %v598 = vld [vmem:[#allocation2 + $0xe4] sm:$0xff]
    %v599 = vld [vmem:[#allocation2 + $0xec] sm:$0xf]
    %v600 = vld [vmem:[#allocation2 + $0xf0] sm:$0xff]
    %v601 = vld [vmem:[#allocation2 + $0xf8] sm:$0xff]
    %v602 = vld [vmem:[#allocation2 + $0x100] sm:$0xf]
    %v603 = vld [vmem:[#allocation2 + $0x104] sm:$0xff]
    %v604 = vld [vmem:[#allocation2 + $0x10c] sm:$0xff]
    %v605 = vld [vmem:[#allocation2 + $0x114] sm:$0xf]
    %v606 = vld [vmem:[#allocation2 + $0x118] sm:$0xff]
    %v607 = vld [vmem:[#allocation2 + $0x120] sm:$0xff]
    %v608 = vld [vmem:[#allocation2 + $0x128] sm:$0xf]
    %v609 = vld [vmem:[#allocation2 + $0x12c] sm:$0xff]
    %v610 = vld [vmem:[#allocation2 + $0x134] sm:$0xff]
    %v611 = vld [vmem:[#allocation2 + $0x13c] sm:$0xf]
    %v612 = vld [vmem:[#allocation2 + $0x140] sm:$0xff]
    %v613 = vld [vmem:[#allocation2 + $0x148] sm:$0xff]
    %v614 = vld [vmem:[#allocation2 + $0x150] sm:$0xf]
    %v615 = vld [vmem:[#allocation2 + $0x154] sm:$0xff]
    %v616 = vld [vmem:[#allocation2 + $0x15c] sm:$0xff]
    %v617 = vld [vmem:[#allocation2 + $0x164] sm:$0xf]
    %v618 = vld [vmem:[#allocation2 + $0x168] sm:$0xff]
    %v619 = vld [vmem:[#allocation2 + $0x170] sm:$0xff]
    %v620 = vld [vmem:[#allocation2 + $0x178] sm:$0xf]
    %v621 = vld [vmem:[#allocation2 + $0x17c] sm:$0xff]
    %v622 = vld [vmem:[#allocation2 + $0x184] sm:$0xff]
    %v623 = vld [vmem:[#allocation2 + $0x18c] sm:$0xf]
    %v624 = vld [vmem:[#allocation2 + $0x190] sm:$0xff]
    %v625 = vld [vmem:[#allocation2 + $0x198] sm:$0xff]
    %v626 = vld [vmem:[#allocation2 + $0x1a0] sm:$0xf]
    %v627 = vld [vmem:[#allocation2 + $0x1a4] sm:$0xff]
    %v628 = vld [vmem:[#allocation2 + $0x1ac] sm:$0xff]
    %v629 = vld [vmem:[#allocation2 + $0x1b4] sm:$0xf]
    %v630 = vld [vmem:[#allocation2 + $0x1b8] sm:$0xff]
    %v631 = vld [vmem:[#allocation2 + $0x1c0] sm:$0xff]
    %v632 = vld [vmem:[#allocation2 + $0x1c8] sm:$0xf]
    %v633 = vld [vmem:[#allocation2 + $0x1cc] sm:$0xff]
    %v634 = vld [vmem:[#allocation2 + $0x1d4] sm:$0xff]
    %v635 = vld [vmem:[#allocation2 + $0x1dc] sm:$0xf]
    %v636 = vld [vmem:[#allocation2 + $0x1e0] sm:$0xff]
    %v637 = vld [vmem:[#allocation2 + $0x1e8] sm:$0xff]
    %v638 = vld [vmem:[#allocation2 + $0x1f0] sm:$0xf]
    %v639 = vld [vmem:[#allocation2 + $0x1f4] sm:$0xff]
    %v640 = vld [vmem:[#allocation2 + $0x1fc] sm:$0xff]
    %v641 = vld [vmem:[#allocation2 + $0x204] sm:$0xf]
    %v642 = vld [vmem:[#allocation2 + $0x208] sm:$0xff]
    %v643 = vld [vmem:[#allocation2 + $0x210] sm:$0xff]
    %v644 = vld [vmem:[#allocation2 + $0x218] sm:$0xf]
    %v645 = vld [vmem:[#allocation2 + $0x21c] sm:$0xff]
    %v646 = vld [vmem:[#allocation2 + $0x224] sm:$0xff]
    %v647 = vld [vmem:[#allocation2 + $0x22c] sm:$0xf]
    %v648 = vld [vmem:[#allocation2 + $0x230] sm:$0xff]
    %v649 = vld [vmem:[#allocation2 + $0x238] sm:$0xff]
    %v650 = vld [vmem:[#allocation2 + $0x240] sm:$0xf]
    %v651 = vld [vmem:[#allocation2 + $0x244] sm:$0xff]
    %v652 = vld [vmem:[#allocation2 + $0x24c] sm:$0xff]
    %v653 = vld [vmem:[#allocation2 + $0x254] sm:$0xf]
    %v654 = vld [vmem:[#allocation2 + $0x258] sm:$0xff]
    %v655 = vld [vmem:[#allocation2 + $0x260] sm:$0xff]
    %v656 = vld [vmem:[#allocation2 + $0x268] sm:$0xf]
    %v657 = vld [vmem:[#allocation2 + $0x26c] sm:$0xff]
    %v658 = vld [vmem:[#allocation2 + $0x274] sm:$0xff]
    %v659 = vld [vmem:[#allocation2 + $0x27c] sm:$0xf]
    %v660 = vld [vmem:[#allocation2 + $0x280] sm:$0xff]
    %v661 = vld [vmem:[#allocation2 + $0x288] sm:$0xff]
    %v662 = vld [vmem:[#allocation2 + $0x290] sm:$0xf]
    %v663 = vld [vmem:[#allocation2 + $0x294] sm:$0xff]
    %v664 = vld [vmem:[#allocation2 + $0x29c] sm:$0xff]
    %v665 = vld [vmem:[#allocation2 + $0x2a4] sm:$0xf]
    %v666 = vld [vmem:[#allocation2 + $0x2a8] sm:$0xff]
    %v667 = vld [vmem:[#allocation2 + $0x2b0] sm:$0xff]
    %v668 = vld [vmem:[#allocation2 + $0x2b8] sm:$0xf]
    %v669 = vld [vmem:[#allocation2 + $0x2bc] sm:$0xff]
    %v670 = vld [vmem:[#allocation2 + $0x2c4] sm:$0xff]
    %v671 = vld [vmem:[#allocation2 + $0x2cc] sm:$0xf]
    %v672 = vld [vmem:[#allocation2 + $0x2d0] sm:$0xff]
    %v673 = vld [vmem:[#allocation2 + $0x2d8] sm:$0xff]
    %v674 = vld [vmem:[#allocation2 + $0x2e0] sm:$0xf]
    %v675 = vld [vmem:[#allocation2 + $0x2e4] sm:$0xff]
    %v676 = vld [vmem:[#allocation2 + $0x2ec] sm:$0xff]
    %v677 = vld [vmem:[#allocation2 + $0x2f4] sm:$0xf]
    %v678 = vld [vmem:[#allocation2 + $0x2f8] sm:$0xff]
    %v679 = vld [vmem:[#allocation2 + $0x300] sm:$0xff]
    %v680 = vld [vmem:[#allocation2 + $0x308] sm:$0xf]
    %v681 = vld [vmem:[#allocation2 + $0x30c] sm:$0xff]
    %v682 = vld [vmem:[#allocation2 + $0x314] sm:$0xff]
    %v683 = vld [vmem:[#allocation2 + $0x31c] sm:$0xf]
    %v684 = vld [vmem:[#allocation2 + $0x320] sm:$0xff]
    %v685 = vld [vmem:[#allocation2 + $0x328] sm:$0xff]
    %v686 = vld [vmem:[#allocation2 + $0x330] sm:$0xf]
    %v687 = vld [vmem:[#allocation2 + $0x334] sm:$0xff]
    %v688 = vld [vmem:[#allocation2 + $0x33c] sm:$0xff]
    %v689 = vld [vmem:[#allocation2 + $0x344] sm:$0xf]
    %v690 = vld [vmem:[#allocation2 + $0x348] sm:$0xff]
    %v691 = vld [vmem:[#allocation2 + $0x350] sm:$0xff]
    %v692 = vld [vmem:[#allocation2 + $0x358] sm:$0xf]
    %v693 = vld [vmem:[#allocation2 + $0x35c] sm:$0xff]
    %v694 = vld [vmem:[#allocation2 + $0x364] sm:$0xff]
    %v695 = vld [vmem:[#allocation2 + $0x36c] sm:$0xf]
    %v696 = vld [vmem:[#allocation2 + $0x370] sm:$0xff]
    %v697 = vld [vmem:[#allocation2 + $0x378] sm:$0xff]
    %v698 = vld [vmem:[#allocation2 + $0x380] sm:$0xf]
    %v699 = vld [vmem:[#allocation2 + $0x384] sm:$0xff]
    %v700 = vld [vmem:[#allocation2 + $0x38c] sm:$0xff]
    %v701 = vld [vmem:[#allocation2 + $0x394] sm:$0xf]
    %v702 = vld [vmem:[#allocation2 + $0x398] sm:$0xff]
    %v703 = vld [vmem:[#allocation2 + $0x3a0] sm:$0xff]
    %v704 = vld [vmem:[#allocation2 + $0x3a8] sm:$0xf]
    %v705 = vld [vmem:[#allocation2 + $0x3ac] sm:$0xff]
    %v706 = vld [vmem:[#allocation2 + $0x3b4] sm:$0xff]
    %v707 = vld [vmem:[#allocation2 + $0x3bc] sm:$0xf]
    %v708 = vld [vmem:[#allocation2 + $0x3c0] sm:$0xff]
    %v709 = vld [vmem:[#allocation2 + $0x3c8] sm:$0xff]
    %v710 = vld [vmem:[#allocation2 + $0x3d0] sm:$0xf]
    %v711 = vld [vmem:[#allocation2 + $0x3d4] sm:$0xff]
    %v712 = vld [vmem:[#allocation2 + $0x3dc] sm:$0xff]
    %v713 = vld [vmem:[#allocation2 + $0x3e4] sm:$0xf]
    %v714 = vld [vmem:[#allocation2 + $0x3e8] sm:$0xff]
    %v715 = vld [vmem:[#allocation2 + $0x3f0] sm:$0xff]
    %v716 = vld [vmem:[#allocation2 + $0x3f8] sm:$0xf]
    %v717 = vld [vmem:[#allocation2 + $0x3fc] sm:$0xff]
    %v718 = vld [vmem:[#allocation2 + $0x404] sm:$0xff]
    %v719 = vld [vmem:[#allocation2 + $0x40c] sm:$0xf]
    %v720 = vld [vmem:[#allocation2 + $0x410] sm:$0xff]
    %v721 = vld [vmem:[#allocation2 + $0x418] sm:$0xff]
    %v722 = vld [vmem:[#allocation2 + $0x420] sm:$0xf]
    %v723 = vld [vmem:[#allocation2 + $0x424] sm:$0xff]
    %v724 = vld [vmem:[#allocation2 + $0x42c] sm:$0xff]
    %v725 = vld [vmem:[#allocation2 + $0x434] sm:$0xf]
    %v726 = vld [vmem:[#allocation2 + $0x438] sm:$0xff]
    %v727 = vld [vmem:[#allocation2 + $0x440] sm:$0xff]
    %v728 = vld [vmem:[#allocation2 + $0x448] sm:$0xf]
    %v729 = vld [vmem:[#allocation2 + $0x44c] sm:$0xff]
    %v730 = vld [vmem:[#allocation2 + $0x454] sm:$0xff]
    %v731 = vld [vmem:[#allocation2 + $0x45c] sm:$0xf]
    %v732 = vld [vmem:[#allocation2 + $0x460] sm:$0xff]
    %v733 = vld [vmem:[#allocation2 + $0x468] sm:$0xff]
    %v734 = vld [vmem:[#allocation2 + $0x470] sm:$0xf]
    %v735 = vld [vmem:[#allocation2 + $0x474] sm:$0xff]
    %v736 = vld [vmem:[#allocation2 + $0x47c] sm:$0xff]
    %v737 = vld [vmem:[#allocation2 + $0x484] sm:$0xf]
    %v738 = vld [vmem:[#allocation2 + $0x488] sm:$0xff]
    %v739 = vld [vmem:[#allocation2 + $0x490] sm:$0xff]
    %v740 = vld [vmem:[#allocation2 + $0x498] sm:$0xf]
    %v741 = vld [vmem:[#allocation2 + $0x49c] sm:$0xff]
    %v742 = vld [vmem:[#allocation2 + $0x4a4] sm:$0xff]
    %v743 = vld [vmem:[#allocation2 + $0x4ac] sm:$0xf]
    %v744 = vld [vmem:[#allocation2 + $0x4b0] sm:$0xff]
    %v745 = vld [vmem:[#allocation2 + $0x4b8] sm:$0xff]
    %v746 = vld [vmem:[#allocation2 + $0x4c0] sm:$0xf]
    %v747 = vld [vmem:[#allocation2 + $0x4c4] sm:$0xff]
    %v748 = vld [vmem:[#allocation2 + $0x4cc] sm:$0xff]
    %v749 = vld [vmem:[#allocation2 + $0x4d4] sm:$0xf]
    %v750 = vld [vmem:[#allocation2 + $0x4d8] sm:$0xff]
    %v751 = vld [vmem:[#allocation2 + $0x4e0] sm:$0xff]
    %v752 = vld [vmem:[#allocation2 + $0x4e8] sm:$0xf]
    %v753 = vld [vmem:[#allocation2 + $0x4ec] sm:$0xff]
    %v754 = vld [vmem:[#allocation2 + $0x4f4] sm:$0xff]
    %v755 = vld [vmem:[#allocation2 + $0x4fc] sm:$0xf]
    %v756 = vld [vmem:[#allocation2 + $0x500] sm:$0xff]
    %v757 = vld [vmem:[#allocation2 + $0x508] sm:$0xff]
    %v758 = vld [vmem:[#allocation2 + $0x510] sm:$0xf]
    %v759 = vld [vmem:[#allocation2 + $0x514] sm:$0xff]
    %v760 = vld [vmem:[#allocation2 + $0x51c] sm:$0xff]
    %v761 = vld [vmem:[#allocation2 + $0x524] sm:$0xf]
    %v762 = vld [vmem:[#allocation2 + $0x528] sm:$0xff]
    %v763 = vld [vmem:[#allocation2 + $0x530] sm:$0xff]
    %v764 = vld [vmem:[#allocation2 + $0x538] sm:$0xf]
    %v765 = vld [vmem:[#allocation2 + $0x53c] sm:$0xff]
    %v766 = vld [vmem:[#allocation2 + $0x544] sm:$0xff]
    %v767 = vld [vmem:[#allocation2 + $0x54c] sm:$0xf]
    %v768 = vld [vmem:[#allocation2 + $0x550] sm:$0xff]
    %v769 = vld [vmem:[#allocation2 + $0x558] sm:$0xff]
    %v770 = vld [vmem:[#allocation2 + $0x560] sm:$0xf]
    %v771 = vld [vmem:[#allocation2 + $0x564] sm:$0xff]
    %v772 = vld [vmem:[#allocation2 + $0x56c] sm:$0xff]
    %v773 = vld [vmem:[#allocation2 + $0x574] sm:$0xf]
    %v774 = vld [vmem:[#allocation2 + $0x578] sm:$0xff]
    %v775 = vld [vmem:[#allocation2 + $0x580] sm:$0xff]
    %v776 = vld [vmem:[#allocation2 + $0x588] sm:$0xf]
    %v777 = vld [vmem:[#allocation2 + $0x58c] sm:$0xff]
    %v778 = vld [vmem:[#allocation2 + $0x594] sm:$0xff]
    %v779 = vld [vmem:[#allocation2 + $0x59c] sm:$0xf]
    %v780 = vld [vmem:[#allocation2 + $0x5a0] sm:$0xff]
    %v781 = vld [vmem:[#allocation2 + $0x5a8] sm:$0xff]
    %v782 = vld [vmem:[#allocation2 + $0x5b0] sm:$0xf]
    %v783 = vld [vmem:[#allocation2 + $0x5b4] sm:$0xff]
    %v784 = vld [vmem:[#allocation2 + $0x5bc] sm:$0xff]
    %v785 = vld [vmem:[#allocation2 + $0x5c4] sm:$0xf]
    %v786 = vld [vmem:[#allocation2 + $0x5c8] sm:$0xff]
    %v787 = vld [vmem:[#allocation2 + $0x5d0] sm:$0xff]
    %v788 = vld [vmem:[#allocation2 + $0x5d8] sm:$0xf]
    %v789 = vld [vmem:[#allocation2 + $0x5dc] sm:$0xff]
    %v790 = vld [vmem:[#allocation2 + $0x5e4] sm:$0xff]
    %v791 = vld [vmem:[#allocation2 + $0x5ec] sm:$0xf]
    %v792 = vld [vmem:[#allocation2 + $0x5f0] sm:$0xff]
    %v793 = vld [vmem:[#allocation2 + $0x5f8] sm:$0xff]
    %v794 = vld [vmem:[#allocation2 + $0x600] sm:$0xf]
    %v795 = vld [vmem:[#allocation2 + $0x604] sm:$0xff]
    %v796 = vld [vmem:[#allocation2 + $0x60c] sm:$0xff]
    %v797 = vld [vmem:[#allocation2 + $0x614] sm:$0xf]
    %v798 = vld [vmem:[#allocation2 + $0x618] sm:$0xff]
    %v799 = vld [vmem:[#allocation2 + $0x620] sm:$0xff]
    %v800 = vld [vmem:[#allocation2 + $0x628] sm:$0xf]
    %v801 = vld [vmem:[#allocation2 + $0x62c] sm:$0xff]
    %v802 = vld [vmem:[#allocation2 + $0x634] sm:$0xff]
    %v803 = vld [vmem:[#allocation2 + $0x63c] sm:$0xf]
    %v1044 = vunpack.c.l.b16 %v564
    %v1045 = vunpack.c.h.b16 %v564
    %v1046 = vunpack.c.l.b16 %v565
    %v1047 = vunpack.c.h.b16 %v565
    %v1048 = vunpack.c.l.b16 %v566
    %v1049 = vunpack.c.l.b16 %v567
    %v1050 = vunpack.c.h.b16 %v567
    %v1051 = vunpack.c.l.b16 %v568
    %v1052 = vunpack.c.h.b16 %v568
    %v1053 = vunpack.c.l.b16 %v569
    %v1054 = vunpack.c.l.b16 %v570
    %v1055 = vunpack.c.h.b16 %v570
    %v1056 = vunpack.c.l.b16 %v571
    %v1057 = vunpack.c.h.b16 %v571
    %v1058 = vunpack.c.l.b16 %v572
    %v1059 = vunpack.c.l.b16 %v573
    %v1060 = vunpack.c.h.b16 %v573
    %v1061 = vunpack.c.l.b16 %v574
    %v1062 = vunpack.c.h.b16 %v574
    %v1063 = vunpack.c.l.b16 %v575
    %v1064 = vunpack.c.l.b16 %v576
    %v1065 = vunpack.c.h.b16 %v576
    %v1066 = vunpack.c.l.b16 %v577
    %v1067 = vunpack.c.h.b16 %v577
    %v1068 = vunpack.c.l.b16 %v578
    %v1069 = vunpack.c.l.b16 %v579
    %v1070 = vunpack.c.h.b16 %v579
    %v1071 = vunpack.c.l.b16 %v580
    %v1072 = vunpack.c.h.b16 %v580
    %v1073 = vunpack.c.l.b16 %v581
    %v1074 = vunpack.c.l.b16 %v582
    %v1075 = vunpack.c.h.b16 %v582
    %v1076 = vunpack.c.l.b16 %v583
    %v1077 = vunpack.c.h.b16 %v583
    %v1078 = vunpack.c.l.b16 %v584
    %v1079 = vunpack.c.l.b16 %v585
    %v1080 = vunpack.c.h.b16 %v585
    %v1081 = vunpack.c.l.b16 %v586
    %v1082 = vunpack.c.h.b16 %v586
    %v1083 = vunpack.c.l.b16 %v587
    %v1084 = vunpack.c.l.b16 %v588
    %v1085 = vunpack.c.h.b16 %v588
    %v1086 = vunpack.c.l.b16 %v589
    %v1087 = vunpack.c.h.b16 %v589
    %v1088 = vunpack.c.l.b16 %v590
    %v1089 = vunpack.c.l.b16 %v591
    %v1090 = vunpack.c.h.b16 %v591
    %v1091 = vunpack.c.l.b16 %v592
    %v1092 = vunpack.c.h.b16 %v592
    %v1093 = vunpack.c.l.b16 %v593
    %v1094 = vunpack.c.l.b16 %v594
    %v1095 = vunpack.c.h.b16 %v594
    %v1096 = vunpack.c.l.b16 %v595
    %v1097 = vunpack.c.h.b16 %v595
    %v1098 = vunpack.c.l.b16 %v596
    %v1099 = vunpack.c.l.b16 %v597
    %v1100 = vunpack.c.h.b16 %v597
    %v1101 = vunpack.c.l.b16 %v598
    %v1102 = vunpack.c.h.b16 %v598
    %v1103 = vunpack.c.l.b16 %v599
    %v1104 = vunpack.c.l.b16 %v600
    %v1105 = vunpack.c.h.b16 %v600
    %v1106 = vunpack.c.l.b16 %v601
    %v1107 = vunpack.c.h.b16 %v601
    %v1108 = vunpack.c.l.b16 %v602
    %v1109 = vunpack.c.l.b16 %v603
    %v1110 = vunpack.c.h.b16 %v603
    %v1111 = vunpack.c.l.b16 %v604
    %v1112 = vunpack.c.h.b16 %v604
    %v1113 = vunpack.c.l.b16 %v605
    %v1114 = vunpack.c.l.b16 %v606
    %v1115 = vunpack.c.h.b16 %v606
    %v1116 = vunpack.c.l.b16 %v607
    %v1117 = vunpack.c.h.b16 %v607
    %v1118 = vunpack.c.l.b16 %v608
    %v1119 = vunpack.c.l.b16 %v609
    %v1120 = vunpack.c.h.b16 %v609
    %v1121 = vunpack.c.l.b16 %v610
    %v1122 = vunpack.c.h.b16 %v610
    %v1123 = vunpack.c.l.b16 %v611
    %v1124 = vunpack.c.l.b16 %v612
    %v1125 = vunpack.c.h.b16 %v612
    %v1126 = vunpack.c.l.b16 %v613
    %v1127 = vunpack.c.h.b16 %v613
    %v1128 = vunpack.c.l.b16 %v614
    %v1129 = vunpack.c.l.b16 %v615
    %v1130 = vunpack.c.h.b16 %v615
    %v1131 = vunpack.c.l.b16 %v616
    %v1132 = vunpack.c.h.b16 %v616
    %v1133 = vunpack.c.l.b16 %v617
    %v1134 = vunpack.c.l.b16 %v618
    %v1135 = vunpack.c.h.b16 %v618
    %v1136 = vunpack.c.l.b16 %v619
    %v1137 = vunpack.c.h.b16 %v619
    %v1138 = vunpack.c.l.b16 %v620
    %v1139 = vunpack.c.l.b16 %v621
    %v1140 = vunpack.c.h.b16 %v621
    %v1141 = vunpack.c.l.b16 %v622
    %v1142 = vunpack.c.h.b16 %v622
    %v1143 = vunpack.c.l.b16 %v623
    %v1144 = vunpack.c.l.b16 %v624
    %v1145 = vunpack.c.h.b16 %v624
    %v1146 = vunpack.c.l.b16 %v625
    %v1147 = vunpack.c.h.b16 %v625
    %v1148 = vunpack.c.l.b16 %v626
    %v1149 = vunpack.c.l.b16 %v627
    %v1150 = vunpack.c.h.b16 %v627
    %v1151 = vunpack.c.l.b16 %v628
    %v1152 = vunpack.c.h.b16 %v628
    %v1153 = vunpack.c.l.b16 %v629
    %v1154 = vunpack.c.l.b16 %v630
    %v1155 = vunpack.c.h.b16 %v630
    %v1156 = vunpack.c.l.b16 %v631
    %v1157 = vunpack.c.h.b16 %v631
    %v1158 = vunpack.c.l.b16 %v632
    %v1159 = vunpack.c.l.b16 %v633
    %v1160 = vunpack.c.h.b16 %v633
    %v1161 = vunpack.c.l.b16 %v634
    %v1162 = vunpack.c.h.b16 %v634
    %v1163 = vunpack.c.l.b16 %v635
    %v1164 = vunpack.c.l.b16 %v636
    %v1165 = vunpack.c.h.b16 %v636
    %v1166 = vunpack.c.l.b16 %v637
    %v1167 = vunpack.c.h.b16 %v637
    %v1168 = vunpack.c.l.b16 %v638
    %v1169 = vunpack.c.l.b16 %v639
    %v1170 = vunpack.c.h.b16 %v639
    %v1171 = vunpack.c.l.b16 %v640
    %v1172 = vunpack.c.h.b16 %v640
    %v1173 = vunpack.c.l.b16 %v641
    %v1174 = vunpack.c.l.b16 %v642
    %v1175 = vunpack.c.h.b16 %v642
    %v1176 = vunpack.c.l.b16 %v643
    %v1177 = vunpack.c.h.b16 %v643
    %v1178 = vunpack.c.l.b16 %v644
    %v1179 = vunpack.c.l.b16 %v645
    %v1180 = vunpack.c.h.b16 %v645
    %v1181 = vunpack.c.l.b16 %v646
    %v1182 = vunpack.c.h.b16 %v646
    %v1183 = vunpack.c.l.b16 %v647
    %v1184 = vunpack.c.l.b16 %v648
    %v1185 = vunpack.c.h.b16 %v648
    %v1186 = vunpack.c.l.b16 %v649
    %v1187 = vunpack.c.h.b16 %v649
    %v1188 = vunpack.c.l.b16 %v650
    %v1189 = vunpack.c.l.b16 %v651
    %v1190 = vunpack.c.h.b16 %v651
    %v1191 = vunpack.c.l.b16 %v652
    %v1192 = vunpack.c.h.b16 %v652
    %v1193 = vunpack.c.l.b16 %v653
    %v1194 = vunpack.c.l.b16 %v654
    %v1195 = vunpack.c.h.b16 %v654
    %v1196 = vunpack.c.l.b16 %v655
    %v1197 = vunpack.c.h.b16 %v655
    %v1198 = vunpack.c.l.b16 %v656
    %v1199 = vunpack.c.l.b16 %v657
    %v1200 = vunpack.c.h.b16 %v657
    %v1201 = vunpack.c.l.b16 %v658
    %v1202 = vunpack.c.h.b16 %v658
    %v1203 = vunpack.c.l.b16 %v659
    %v1204 = vunpack.c.l.b16 %v660
    %v1205 = vunpack.c.h.b16 %v660
    %v1206 = vunpack.c.l.b16 %v661
    %v1207 = vunpack.c.h.b16 %v661
    %v1208 = vunpack.c.l.b16 %v662
    %v1209 = vunpack.c.l.b16 %v663
    %v1210 = vunpack.c.h.b16 %v663
    %v1211 = vunpack.c.l.b16 %v664
    %v1212 = vunpack.c.h.b16 %v664
    %v1213 = vunpack.c.l.b16 %v665
    %v1214 = vunpack.c.l.b16 %v666
    %v1215 = vunpack.c.h.b16 %v666
    %v1216 = vunpack.c.l.b16 %v667
    %v1217 = vunpack.c.h.b16 %v667
    %v1218 = vunpack.c.l.b16 %v668
    %v1219 = vunpack.c.l.b16 %v669
    %v1220 = vunpack.c.h.b16 %v669
    %v1221 = vunpack.c.l.b16 %v670
    %v1222 = vunpack.c.h.b16 %v670
    %v1223 = vunpack.c.l.b16 %v671
    %v1224 = vunpack.c.l.b16 %v672
    %v1225 = vunpack.c.h.b16 %v672
    %v1226 = vunpack.c.l.b16 %v673
    %v1227 = vunpack.c.h.b16 %v673
    %v1228 = vunpack.c.l.b16 %v674
    %v1229 = vunpack.c.l.b16 %v675
    %v1230 = vunpack.c.h.b16 %v675
    %v1231 = vunpack.c.l.b16 %v676
    %v1232 = vunpack.c.h.b16 %v676
    %v1233 = vunpack.c.l.b16 %v677
    %v1234 = vunpack.c.l.b16 %v678
    %v1235 = vunpack.c.h.b16 %v678
    %v1236 = vunpack.c.l.b16 %v679
    %v1237 = vunpack.c.h.b16 %v679
    %v1238 = vunpack.c.l.b16 %v680
    %v1239 = vunpack.c.l.b16 %v681
    %v1240 = vunpack.c.h.b16 %v681
    %v1241 = vunpack.c.l.b16 %v682
    %v1242 = vunpack.c.h.b16 %v682
    %v1243 = vunpack.c.l.b16 %v683
    %v1244 = vunpack.c.l.b16 %v684
    %v1245 = vunpack.c.h.b16 %v684
    %v1246 = vunpack.c.l.b16 %v685
    %v1247 = vunpack.c.h.b16 %v685
    %v1248 = vunpack.c.l.b16 %v686
    %v1249 = vunpack.c.l.b16 %v687
    %v1250 = vunpack.c.h.b16 %v687
    %v1251 = vunpack.c.l.b16 %v688
    %v1252 = vunpack.c.h.b16 %v688
    %v1253 = vunpack.c.l.b16 %v689
    %v1254 = vunpack.c.l.b16 %v690
    %v1255 = vunpack.c.h.b16 %v690
    %v1256 = vunpack.c.l.b16 %v691
    %v1257 = vunpack.c.h.b16 %v691
    %v1258 = vunpack.c.l.b16 %v692
    %v1259 = vunpack.c.l.b16 %v693
    %v1260 = vunpack.c.h.b16 %v693
    %v1261 = vunpack.c.l.b16 %v694
    %v1262 = vunpack.c.h.b16 %v694
    %v1263 = vunpack.c.l.b16 %v695
    %v1264 = vunpack.c.l.b16 %v696
    %v1265 = vunpack.c.h.b16 %v696
    %v1266 = vunpack.c.l.b16 %v697
    %v1267 = vunpack.c.h.b16 %v697
    %v1268 = vunpack.c.l.b16 %v698
    %v1269 = vunpack.c.l.b16 %v699
    %v1270 = vunpack.c.h.b16 %v699
    %v1271 = vunpack.c.l.b16 %v700
    %v1272 = vunpack.c.h.b16 %v700
    %v1273 = vunpack.c.l.b16 %v701
    %v1274 = vunpack.c.l.b16 %v702
    %v1275 = vunpack.c.h.b16 %v702
    %v1276 = vunpack.c.l.b16 %v703
    %v1277 = vunpack.c.h.b16 %v703
    %v1278 = vunpack.c.l.b16 %v704
    %v1279 = vunpack.c.l.b16 %v705
    %v1280 = vunpack.c.h.b16 %v705
    %v1281 = vunpack.c.l.b16 %v706
    %v1282 = vunpack.c.h.b16 %v706
    %v1283 = vunpack.c.l.b16 %v707
    %v1284 = vunpack.c.l.b16 %v708
    %v1285 = vunpack.c.h.b16 %v708
    %v1286 = vunpack.c.l.b16 %v709
    %v1287 = vunpack.c.h.b16 %v709
    %v1288 = vunpack.c.l.b16 %v710
    %v1289 = vunpack.c.l.b16 %v711
    %v1290 = vunpack.c.h.b16 %v711
    %v1291 = vunpack.c.l.b16 %v712
    %v1292 = vunpack.c.h.b16 %v712
    %v1293 = vunpack.c.l.b16 %v713
    %v1294 = vunpack.c.l.b16 %v714
    %v1295 = vunpack.c.h.b16 %v714
    %v1296 = vunpack.c.l.b16 %v715
    %v1297 = vunpack.c.h.b16 %v715
    %v1298 = vunpack.c.l.b16 %v716
    %v1299 = vunpack.c.l.b16 %v717
    %v1300 = vunpack.c.h.b16 %v717
    %v1301 = vunpack.c.l.b16 %v718
    %v1302 = vunpack.c.h.b16 %v718
    %v1303 = vunpack.c.l.b16 %v719
    %v1304 = vunpack.c.l.b16 %v720
    %v1305 = vunpack.c.h.b16 %v720
    %v1306 = vunpack.c.l.b16 %v721
    %v1307 = vunpack.c.h.b16 %v721
    %v1308 = vunpack.c.l.b16 %v722
    %v1309 = vunpack.c.l.b16 %v723
    %v1310 = vunpack.c.h.b16 %v723
    %v1311 = vunpack.c.l.b16 %v724
    %v1312 = vunpack.c.h.b16 %v724
    %v1313 = vunpack.c.l.b16 %v725
    %v1314 = vunpack.c.l.b16 %v726
    %v1315 = vunpack.c.h.b16 %v726
    %v1316 = vunpack.c.l.b16 %v727
    %v1317 = vunpack.c.h.b16 %v727
    %v1318 = vunpack.c.l.b16 %v728
    %v1319 = vunpack.c.l.b16 %v729
    %v1320 = vunpack.c.h.b16 %v729
    %v1321 = vunpack.c.l.b16 %v730
    %v1322 = vunpack.c.h.b16 %v730
    %v1323 = vunpack.c.l.b16 %v731
    %v1324 = vunpack.c.l.b16 %v732
    %v1325 = vunpack.c.h.b16 %v732
    %v1326 = vunpack.c.l.b16 %v733
    %v1327 = vunpack.c.h.b16 %v733
    %v1328 = vunpack.c.l.b16 %v734
    %v1329 = vunpack.c.l.b16 %v735
    %v1330 = vunpack.c.h.b16 %v735
    %v1331 = vunpack.c.l.b16 %v736
    %v1332 = vunpack.c.h.b16 %v736
    %v1333 = vunpack.c.l.b16 %v737
    %v1334 = vunpack.c.l.b16 %v738
    %v1335 = vunpack.c.h.b16 %v738
    %v1336 = vunpack.c.l.b16 %v739
    %v1337 = vunpack.c.h.b16 %v739
    %v1338 = vunpack.c.l.b16 %v740
    %v1339 = vunpack.c.l.b16 %v741
    %v1340 = vunpack.c.h.b16 %v741
    %v1341 = vunpack.c.l.b16 %v742
    %v1342 = vunpack.c.h.b16 %v742
    %v1343 = vunpack.c.l.b16 %v743
    %v1344 = vunpack.c.l.b16 %v744
    %v1345 = vunpack.c.h.b16 %v744
    %v1346 = vunpack.c.l.b16 %v745
    %v1347 = vunpack.c.h.b16 %v745
    %v1348 = vunpack.c.l.b16 %v746
    %v1349 = vunpack.c.l.b16 %v747
    %v1350 = vunpack.c.h.b16 %v747
    %v1351 = vunpack.c.l.b16 %v748
    %v1352 = vunpack.c.h.b16 %v748
    %v1353 = vunpack.c.l.b16 %v749
    %v1354 = vunpack.c.l.b16 %v750
    %v1355 = vunpack.c.h.b16 %v750
    %v1356 = vunpack.c.l.b16 %v751
    %v1357 = vunpack.c.h.b16 %v751
    %v1358 = vunpack.c.l.b16 %v752
    %v1359 = vunpack.c.l.b16 %v753
    %v1360 = vunpack.c.h.b16 %v753
    %v1361 = vunpack.c.l.b16 %v754
    %v1362 = vunpack.c.h.b16 %v754
    %v1363 = vunpack.c.l.b16 %v755
    %v1364 = vunpack.c.l.b16 %v756
    %v1365 = vunpack.c.h.b16 %v756
    %v1366 = vunpack.c.l.b16 %v757
    %v1367 = vunpack.c.h.b16 %v757
    %v1368 = vunpack.c.l.b16 %v758
    %v1369 = vunpack.c.l.b16 %v759
    %v1370 = vunpack.c.h.b16 %v759
    %v1371 = vunpack.c.l.b16 %v760
    %v1372 = vunpack.c.h.b16 %v760
    %v1373 = vunpack.c.l.b16 %v761
    %v1374 = vunpack.c.l.b16 %v762
    %v1375 = vunpack.c.h.b16 %v762
    %v1376 = vunpack.c.l.b16 %v763
    %v1377 = vunpack.c.h.b16 %v763
    %v1378 = vunpack.c.l.b16 %v764
    %v1379 = vunpack.c.l.b16 %v765
    %v1380 = vunpack.c.h.b16 %v765
    %v1381 = vunpack.c.l.b16 %v766
    %v1382 = vunpack.c.h.b16 %v766
    %v1383 = vunpack.c.l.b16 %v767
    %v1384 = vunpack.c.l.b16 %v768
    %v1385 = vunpack.c.h.b16 %v768
    %v1386 = vunpack.c.l.b16 %v769
    %v1387 = vunpack.c.h.b16 %v769
    %v1388 = vunpack.c.l.b16 %v770
    %v1389 = vunpack.c.l.b16 %v771
    %v1390 = vunpack.c.h.b16 %v771
    %v1391 = vunpack.c.l.b16 %v772
    %v1392 = vunpack.c.h.b16 %v772
    %v1393 = vunpack.c.l.b16 %v773
    %v1394 = vunpack.c.l.b16 %v774
    %v1395 = vunpack.c.h.b16 %v774
    %v1396 = vunpack.c.l.b16 %v775
    %v1397 = vunpack.c.h.b16 %v775
    %v1398 = vunpack.c.l.b16 %v776
    %v1399 = vunpack.c.l.b16 %v777
    %v1400 = vunpack.c.h.b16 %v777
    %v1401 = vunpack.c.l.b16 %v778
    %v1402 = vunpack.c.h.b16 %v778
    %v1403 = vunpack.c.l.b16 %v779
    %v1404 = vunpack.c.l.b16 %v780
    %v1405 = vunpack.c.h.b16 %v780
    %v1406 = vunpack.c.l.b16 %v781
    %v1407 = vunpack.c.h.b16 %v781
    %v1408 = vunpack.c.l.b16 %v782
    %v1409 = vunpack.c.l.b16 %v783
    %v1410 = vunpack.c.h.b16 %v783
    %v1411 = vunpack.c.l.b16 %v784
    %v1412 = vunpack.c.h.b16 %v784
    %v1413 = vunpack.c.l.b16 %v785
    %v1414 = vunpack.c.l.b16 %v786
    %v1415 = vunpack.c.h.b16 %v786
    %v1416 = vunpack.c.l.b16 %v787
    %v1417 = vunpack.c.h.b16 %v787
    %v1418 = vunpack.c.l.b16 %v788
    %v1419 = vunpack.c.l.b16 %v789
    %v1420 = vunpack.c.h.b16 %v789
    %v1421 = vunpack.c.l.b16 %v790
    %v1422 = vunpack.c.h.b16 %v790
    %v1423 = vunpack.c.l.b16 %v791
    %v1424 = vunpack.c.l.b16 %v792
    %v1425 = vunpack.c.h.b16 %v792
    %v1426 = vunpack.c.l.b16 %v793
    %v1427 = vunpack.c.h.b16 %v793
    %v1428 = vunpack.c.l.b16 %v794
    %v1429 = vunpack.c.l.b16 %v795
    %v1430 = vunpack.c.h.b16 %v795
    %v1431 = vunpack.c.l.b16 %v796
    %v1432 = vunpack.c.h.b16 %v796
    %v1433 = vunpack.c.l.b16 %v797
    %v1434 = vunpack.c.l.b16 %v798
    %v1435 = vunpack.c.h.b16 %v798
    %v1436 = vunpack.c.l.b16 %v799
    %v1437 = vunpack.c.h.b16 %v799
    %v1438 = vunpack.c.l.b16 %v800
    %v1439 = vunpack.c.l.b16 %v801
    %v1440 = vunpack.c.h.b16 %v801
    %v1441 = vunpack.c.l.b16 %v802
    %v1442 = vunpack.c.h.b16 %v802
    %v1443 = vunpack.c.l.b16 %v803
    %v1444 = vpack.c.b16 %v1049, %v1044
    %v1445 = vpack.c.b16 %v1050, %v1045
    %v1446 = vpack.c.b16 %v1051, %v1046
    %v1447 = vpack.c.b16 %v1052, %v1047
    %v1448 = vpack.c.b16 %v1053, %v1048
    %v1449 = vpack.c.b16 %v1059, %v1054
    %v1450 = vpack.c.b16 %v1060, %v1055
    %v1451 = vpack.c.b16 %v1061, %v1056
    %v1452 = vpack.c.b16 %v1062, %v1057
    %v1453 = vpack.c.b16 %v1063, %v1058
    %v1454 = vpack.c.b16 %v1069, %v1064
    %v1455 = vpack.c.b16 %v1070, %v1065
    %v1456 = vpack.c.b16 %v1071, %v1066
    %v1457 = vpack.c.b16 %v1072, %v1067
    %v1458 = vpack.c.b16 %v1073, %v1068
    %v1459 = vpack.c.b16 %v1079, %v1074
    %v1460 = vpack.c.b16 %v1080, %v1075
    %v1461 = vpack.c.b16 %v1081, %v1076
    %v1462 = vpack.c.b16 %v1082, %v1077
    %v1463 = vpack.c.b16 %v1083, %v1078
    %v1464 = vpack.c.b16 %v1089, %v1084
    %v1465 = vpack.c.b16 %v1090, %v1085
    %v1466 = vpack.c.b16 %v1091, %v1086
    %v1467 = vpack.c.b16 %v1092, %v1087
    %v1468 = vpack.c.b16 %v1093, %v1088
    %v1469 = vpack.c.b16 %v1099, %v1094
    %v1470 = vpack.c.b16 %v1100, %v1095
    %v1471 = vpack.c.b16 %v1101, %v1096
    %v1472 = vpack.c.b16 %v1102, %v1097
    %v1473 = vpack.c.b16 %v1103, %v1098
    %v1474 = vpack.c.b16 %v1109, %v1104
    %v1475 = vpack.c.b16 %v1110, %v1105
    %v1476 = vpack.c.b16 %v1111, %v1106
    %v1477 = vpack.c.b16 %v1112, %v1107
    %v1478 = vpack.c.b16 %v1113, %v1108
    %v1479 = vpack.c.b16 %v1119, %v1114
    %v1480 = vpack.c.b16 %v1120, %v1115
    %v1481 = vpack.c.b16 %v1121, %v1116
    %v1482 = vpack.c.b16 %v1122, %v1117
    %v1483 = vpack.c.b16 %v1123, %v1118
    %v1484 = vpack.c.b16 %v1129, %v1124
    %v1485 = vpack.c.b16 %v1130, %v1125
    %v1486 = vpack.c.b16 %v1131, %v1126
    %v1487 = vpack.c.b16 %v1132, %v1127
    %v1488 = vpack.c.b16 %v1133, %v1128
    %v1489 = vpack.c.b16 %v1139, %v1134
    %v1490 = vpack.c.b16 %v1140, %v1135
    %v1491 = vpack.c.b16 %v1141, %v1136
    %v1492 = vpack.c.b16 %v1142, %v1137
    %v1493 = vpack.c.b16 %v1143, %v1138
    %v1494 = vpack.c.b16 %v1149, %v1144
    %v1495 = vpack.c.b16 %v1150, %v1145
    %v1496 = vpack.c.b16 %v1151, %v1146
    %v1497 = vpack.c.b16 %v1152, %v1147
    %v1498 = vpack.c.b16 %v1153, %v1148
    %v1499 = vpack.c.b16 %v1159, %v1154
    %v1500 = vpack.c.b16 %v1160, %v1155
    %v1501 = vpack.c.b16 %v1161, %v1156
    %v1502 = vpack.c.b16 %v1162, %v1157
    %v1503 = vpack.c.b16 %v1163, %v1158
    %v1504 = vpack.c.b16 %v1169, %v1164
    %v1505 = vpack.c.b16 %v1170, %v1165
    %v1506 = vpack.c.b16 %v1171, %v1166
    %v1507 = vpack.c.b16 %v1172, %v1167
    %v1508 = vpack.c.b16 %v1173, %v1168
    %v1509 = vpack.c.b16 %v1179, %v1174
    %v1510 = vpack.c.b16 %v1180, %v1175
    %v1511 = vpack.c.b16 %v1181, %v1176
    %v1512 = vpack.c.b16 %v1182, %v1177
    %v1513 = vpack.c.b16 %v1183, %v1178
    %v1514 = vpack.c.b16 %v1189, %v1184
    %v1515 = vpack.c.b16 %v1190, %v1185
    %v1516 = vpack.c.b16 %v1191, %v1186
    %v1517 = vpack.c.b16 %v1192, %v1187
    %v1518 = vpack.c.b16 %v1193, %v1188
    %v1519 = vpack.c.b16 %v1199, %v1194
    %v1520 = vpack.c.b16 %v1200, %v1195
    %v1521 = vpack.c.b16 %v1201, %v1196
    %v1522 = vpack.c.b16 %v1202, %v1197
    %v1523 = vpack.c.b16 %v1203, %v1198
    %v1524 = vpack.c.b16 %v1209, %v1204
    %v1525 = vpack.c.b16 %v1210, %v1205
    %v1526 = vpack.c.b16 %v1211, %v1206
    %v1527 = vpack.c.b16 %v1212, %v1207
    %v1528 = vpack.c.b16 %v1213, %v1208
    %v1529 = vpack.c.b16 %v1219, %v1214
    %v1530 = vpack.c.b16 %v1220, %v1215
    %v1531 = vpack.c.b16 %v1221, %v1216
    %v1532 = vpack.c.b16 %v1222, %v1217
    %v1533 = vpack.c.b16 %v1223, %v1218
    %v1534 = vpack.c.b16 %v1229, %v1224
    %v1535 = vpack.c.b16 %v1230, %v1225
    %v1536 = vpack.c.b16 %v1231, %v1226
    %v1537 = vpack.c.b16 %v1232, %v1227
    %v1538 = vpack.c.b16 %v1233, %v1228
    %v1539 = vpack.c.b16 %v1239, %v1234
    %v1540 = vpack.c.b16 %v1240, %v1235
    %v1541 = vpack.c.b16 %v1241, %v1236
    %v1542 = vpack.c.b16 %v1242, %v1237
    %v1543 = vpack.c.b16 %v1243, %v1238
    %v1544 = vpack.c.b16 %v1249, %v1244
    %v1545 = vpack.c.b16 %v1250, %v1245
    %v1546 = vpack.c.b16 %v1251, %v1246
    %v1547 = vpack.c.b16 %v1252, %v1247
    %v1548 = vpack.c.b16 %v1253, %v1248
    %v1549 = vpack.c.b16 %v1259, %v1254
    %v1550 = vpack.c.b16 %v1260, %v1255
    %v1551 = vpack.c.b16 %v1261, %v1256
    %v1552 = vpack.c.b16 %v1262, %v1257
    %v1553 = vpack.c.b16 %v1263, %v1258
    %v1554 = vpack.c.b16 %v1269, %v1264
    %v1555 = vpack.c.b16 %v1270, %v1265
    %v1556 = vpack.c.b16 %v1271, %v1266
    %v1557 = vpack.c.b16 %v1272, %v1267
    %v1558 = vpack.c.b16 %v1273, %v1268
    %v1559 = vpack.c.b16 %v1279, %v1274
    %v1560 = vpack.c.b16 %v1280, %v1275
    %v1561 = vpack.c.b16 %v1281, %v1276
    %v1562 = vpack.c.b16 %v1282, %v1277
    %v1563 = vpack.c.b16 %v1283, %v1278
    %v1564 = vpack.c.b16 %v1289, %v1284
    %v1565 = vpack.c.b16 %v1290, %v1285
    %v1566 = vpack.c.b16 %v1291, %v1286
    %v1567 = vpack.c.b16 %v1292, %v1287
    %v1568 = vpack.c.b16 %v1293, %v1288
    %v1569 = vpack.c.b16 %v1299, %v1294
    %v1570 = vpack.c.b16 %v1300, %v1295
    %v1571 = vpack.c.b16 %v1301, %v1296
    %v1572 = vpack.c.b16 %v1302, %v1297
    %v1573 = vpack.c.b16 %v1303, %v1298
    %v1574 = vpack.c.b16 %v1309, %v1304
    %v1575 = vpack.c.b16 %v1310, %v1305
    %v1576 = vpack.c.b16 %v1311, %v1306
    %v1577 = vpack.c.b16 %v1312, %v1307
    %v1578 = vpack.c.b16 %v1313, %v1308
    %v1579 = vpack.c.b16 %v1319, %v1314
    %v1580 = vpack.c.b16 %v1320, %v1315
    %v1581 = vpack.c.b16 %v1321, %v1316
    %v1582 = vpack.c.b16 %v1322, %v1317
    %v1583 = vpack.c.b16 %v1323, %v1318
    %v1584 = vpack.c.b16 %v1329, %v1324
    %v1585 = vpack.c.b16 %v1330, %v1325
    %v1586 = vpack.c.b16 %v1331, %v1326
    %v1587 = vpack.c.b16 %v1332, %v1327
    %v1588 = vpack.c.b16 %v1333, %v1328
    %v1589 = vpack.c.b16 %v1339, %v1334
    %v1590 = vpack.c.b16 %v1340, %v1335
    %v1591 = vpack.c.b16 %v1341, %v1336
    %v1592 = vpack.c.b16 %v1342, %v1337
    %v1593 = vpack.c.b16 %v1343, %v1338
    %v1594 = vpack.c.b16 %v1349, %v1344
    %v1595 = vpack.c.b16 %v1350, %v1345
    %v1596 = vpack.c.b16 %v1351, %v1346
    %v1597 = vpack.c.b16 %v1352, %v1347
    %v1598 = vpack.c.b16 %v1353, %v1348
    %v1599 = vpack.c.b16 %v1359, %v1354
    %v1600 = vpack.c.b16 %v1360, %v1355
    %v1601 = vpack.c.b16 %v1361, %v1356
    %v1602 = vpack.c.b16 %v1362, %v1357
    %v1603 = vpack.c.b16 %v1363, %v1358
    %v1604 = vpack.c.b16 %v1369, %v1364
    %v1605 = vpack.c.b16 %v1370, %v1365
    %v1606 = vpack.c.b16 %v1371, %v1366
    %v1607 = vpack.c.b16 %v1372, %v1367
    %v1608 = vpack.c.b16 %v1373, %v1368
    %v1609 = vpack.c.b16 %v1379, %v1374
    %v1610 = vpack.c.b16 %v1380, %v1375
    %v1611 = vpack.c.b16 %v1381, %v1376
    %v1612 = vpack.c.b16 %v1382, %v1377
    %v1613 = vpack.c.b16 %v1383, %v1378
    %v1614 = vpack.c.b16 %v1389, %v1384
    %v1615 = vpack.c.b16 %v1390, %v1385
    %v1616 = vpack.c.b16 %v1391, %v1386
    %v1617 = vpack.c.b16 %v1392, %v1387
    %v1618 = vpack.c.b16 %v1393, %v1388
    %v1619 = vpack.c.b16 %v1399, %v1394
    %v1620 = vpack.c.b16 %v1400, %v1395
    %v1621 = vpack.c.b16 %v1401, %v1396
    %v1622 = vpack.c.b16 %v1402, %v1397
    %v1623 = vpack.c.b16 %v1403, %v1398
    %v1624 = vpack.c.b16 %v1409, %v1404
    %v1625 = vpack.c.b16 %v1410, %v1405
    %v1626 = vpack.c.b16 %v1411, %v1406
    %v1627 = vpack.c.b16 %v1412, %v1407
    %v1628 = vpack.c.b16 %v1413, %v1408
    %v1629 = vpack.c.b16 %v1419, %v1414
    %v1630 = vpack.c.b16 %v1420, %v1415
    %v1631 = vpack.c.b16 %v1421, %v1416
    %v1632 = vpack.c.b16 %v1422, %v1417
    %v1633 = vpack.c.b16 %v1423, %v1418
    %v1634 = vpack.c.b16 %v1429, %v1424
    %v1635 = vpack.c.b16 %v1430, %v1425
    %v1636 = vpack.c.b16 %v1431, %v1426
    %v1637 = vpack.c.b16 %v1432, %v1427
    %v1638 = vpack.c.b16 %v1433, %v1428
    %v1639 = vpack.c.b16 %v1439, %v1434
    %v1640 = vpack.c.b16 %v1440, %v1435
    %v1641 = vpack.c.b16 %v1441, %v1436
    %v1642 = vpack.c.b16 %v1442, %v1437
    %v1643 = vpack.c.b16 %v1443, %v1438
    %1844 = vmatpush.bf16.msra.mxu0 %v1479
    %1845 = vmatpush.bf16.msra.mxu0 %v1474
    %1846 = vmatpush.bf16.msra.mxu0 %v1469
    %1847 = vmatpush.bf16.msra.mxu0 %v1464
    %1848 = vmatpush.bf16.msra.mxu0 %v1459
    %1849 = vmatpush.bf16.msra.mxu0 %v1454
    %1850 = vmatpush.bf16.msra.mxu0 %v1449
    %1851 = vmatpush.bf16.msra.mxu0 %v1444
    %1852 = vmatmul.bf16.gmra.mxu0 %v559
    %v1853 = vpop.f32.mrf.mxu0
    %v1854 = vadd.f32 0.0, %v1853
    %v1855 = vpop.f32.mrf.mxu0
    %1856 = vdwg.mxu0
    %1857 = vmatpush.bf16.msra.mxu0 %v1519
    %1858 = vmatpush.bf16.msra.mxu0 %v1514
    %1859 = vmatpush.bf16.msra.mxu0 %v1509
    %1860 = vmatpush.bf16.msra.mxu0 %v1504
    %1861 = vmatpush.bf16.msra.mxu0 %v1499
    %1862 = vmatpush.bf16.msra.mxu0 %v1494
    %1863 = vmatpush.bf16.msra.mxu0 %v1489
    %1864 = vmatpush.bf16.msra.mxu0 %v1484
    %1865 = vmatmul.bf16.gmra.mxu0 %v560
    %v1866 = vpop.f32.mrf.mxu0
    %v1867 = vadd.f32 %v1854, %v1866
    %v1868 = vpop.f32.mrf.mxu0
    %1869 = vdwg.mxu0
    %1870 = vmatpush.bf16.msra.mxu0 %v1559
    %1871 = vmatpush.bf16.msra.mxu0 %v1554
    %1872 = vmatpush.bf16.msra.mxu0 %v1549
    %1873 = vmatpush.bf16.msra.mxu0 %v1544
    %1874 = vmatpush.bf16.msra.mxu0 %v1539
    %1875 = vmatpush.bf16.msra.mxu0 %v1534
    %1876 = vmatpush.bf16.msra.mxu0 %v1529
    %1877 = vmatpush.bf16.msra.mxu0 %v1524
    %1878 = vmatmul.bf16.gmra.mxu0 %v561
    %v1879 = vpop.f32.mrf.mxu0
    %v1880 = vadd.f32 %v1867, %v1879
    %v1881 = vpop.f32.mrf.mxu0
    %1882 = vdwg.mxu0
    %1883 = vmatpush.bf16.msra.mxu0 %v1599
    %1884 = vmatpush.bf16.msra.mxu0 %v1594
    %1885 = vmatpush.bf16.msra.mxu0 %v1589
    %1886 = vmatpush.bf16.msra.mxu0 %v1584
    %1887 = vmatpush.bf16.msra.mxu0 %v1579
    %1888 = vmatpush.bf16.msra.mxu0 %v1574
    %1889 = vmatpush.bf16.msra.mxu0 %v1569
    %1890 = vmatpush.bf16.msra.mxu0 %v1564
    %1891 = vmatmul.bf16.gmra.mxu0 %v562
    %v1892 = vpop.f32.mrf.mxu0
    %v1893 = vadd.f32 %v1880, %v1892
    %v1894 = vpop.f32.mrf.mxu0
    %1895 = vdwg.mxu0
    %1896 = vmatpush.bf16.msra.mxu0 %v1639
    %1897 = vmatpush.bf16.msra.mxu0 %v1634
    %1898 = vmatpush.bf16.msra.mxu0 %v1629
    %1899 = vmatpush.bf16.msra.mxu0 %v1624
    %1900 = vmatpush.bf16.msra.mxu0 %v1619
    %1901 = vmatpush.bf16.msra.mxu0 %v1614
    %1902 = vmatpush.bf16.msra.mxu0 %v1609
    %1903 = vmatpush.bf16.msra.mxu0 %v1604
    %1904 = vmatmul.bf16.gmra.mxu0 %v563
    %v1905 = vpop.f32.mrf.mxu0
    %v1906 = vadd.f32 %v1893, %v1905
    %v1907 = vpop.f32.mrf.mxu0
    %1908 = vdwg.mxu0
    %1909 = vmatpush.bf16.msra.mxu0 %v1480
    %1910 = vmatpush.bf16.msra.mxu0 %v1475
    %1911 = vmatpush.bf16.msra.mxu0 %v1470
    %1912 = vmatpush.bf16.msra.mxu0 %v1465
    %1913 = vmatpush.bf16.msra.mxu0 %v1460
    %1914 = vmatpush.bf16.msra.mxu0 %v1455
    %1915 = vmatpush.bf16.msra.mxu0 %v1450
    %1916 = vmatpush.bf16.msra.mxu0 %v1445
    %1917 = vmatmul.bf16.gmra.mxu0 %v559
    %v1918 = vpop.f32.mrf.mxu0
    %v1919 = vadd.f32 0.0, %v1918
    %v1920 = vpop.f32.mrf.mxu0
    %1921 = vdwg.mxu0
    %1922 = vmatpush.bf16.msra.mxu0 %v1520
    %1923 = vmatpush.bf16.msra.mxu0 %v1515
    %1924 = vmatpush.bf16.msra.mxu0 %v1510
    %1925 = vmatpush.bf16.msra.mxu0 %v1505
    %1926 = vmatpush.bf16.msra.mxu0 %v1500
    %1927 = vmatpush.bf16.msra.mxu0 %v1495
    %1928 = vmatpush.bf16.msra.mxu0 %v1490
    %1929 = vmatpush.bf16.msra.mxu0 %v1485
    %1930 = vmatmul.bf16.gmra.mxu0 %v560
    %v1931 = vpop.f32.mrf.mxu0
    %v1932 = vadd.f32 %v1919, %v1931
    %v1933 = vpop.f32.mrf.mxu0
    %1934 = vdwg.mxu0
    %1935 = vmatpush.bf16.msra.mxu0 %v1560
    %1936 = vmatpush.bf16.msra.mxu0 %v1555
    %1937 = vmatpush.bf16.msra.mxu0 %v1550
    %1938 = vmatpush.bf16.msra.mxu0 %v1545
    %1939 = vmatpush.bf16.msra.mxu0 %v1540
    %1940 = vmatpush.bf16.msra.mxu0 %v1535
    %1941 = vmatpush.bf16.msra.mxu0 %v1530
    %1942 = vmatpush.bf16.msra.mxu0 %v1525
    %1943 = vmatmul.bf16.gmra.mxu0 %v561
    %v1944 = vpop.f32.mrf.mxu0
    %v1945 = vadd.f32 %v1932, %v1944
    %v1946 = vpop.f32.mrf.mxu0
    %1947 = vdwg.mxu0
    %1948 = vmatpush.bf16.msra.mxu0 %v1600
    %1949 = vmatpush.bf16.msra.mxu0 %v1595
    %1950 = vmatpush.bf16.msra.mxu0 %v1590
    %1951 = vmatpush.bf16.msra.mxu0 %v1585
    %1952 = vmatpush.bf16.msra.mxu0 %v1580
    %1953 = vmatpush.bf16.msra.mxu0 %v1575
    %1954 = vmatpush.bf16.msra.mxu0 %v1570
    %1955 = vmatpush.bf16.msra.mxu0 %v1565
    %1956 = vmatmul.bf16.gmra.mxu0 %v562
    %v1957 = vpop.f32.mrf.mxu0
    %v1958 = vadd.f32 %v1945, %v1957
    %v1959 = vpop.f32.mrf.mxu0
    %1960 = vdwg.mxu0
    %1961 = vmatpush.bf16.msra.mxu0 %v1640
    %1962 = vmatpush.bf16.msra.mxu0 %v1635
    %1963 = vmatpush.bf16.msra.mxu0 %v1630
    %1964 = vmatpush.bf16.msra.mxu0 %v1625
    %1965 = vmatpush.bf16.msra.mxu0 %v1620
    %1966 = vmatpush.bf16.msra.mxu0 %v1615
    %1967 = vmatpush.bf16.msra.mxu0 %v1610
    %1968 = vmatpush.bf16.msra.mxu0 %v1605
    %1969 = vmatmul.bf16.gmra.mxu0 %v563
    %v1970 = vpop.f32.mrf.mxu0
    %v1971 = vadd.f32 %v1958, %v1970
    %v1972 = vpop.f32.mrf.mxu0
    %1973 = vdwg.mxu0
    %1974 = vmatpush.bf16.msra.mxu0 %v1481
    %1975 = vmatpush.bf16.msra.mxu0 %v1476
    %1976 = vmatpush.bf16.msra.mxu0 %v1471
    %1977 = vmatpush.bf16.msra.mxu0 %v1466
    %1978 = vmatpush.bf16.msra.mxu0 %v1461
    %1979 = vmatpush.bf16.msra.mxu0 %v1456
    %1980 = vmatpush.bf16.msra.mxu0 %v1451
    %1981 = vmatpush.bf16.msra.mxu0 %v1446
    %1982 = vmatmul.bf16.gmra.mxu0 %v559
    %v1983 = vpop.f32.mrf.mxu0
    %v1984 = vadd.f32 0.0, %v1983
    %v1985 = vpop.f32.mrf.mxu0
    %1986 = vdwg.mxu0
    %1987 = vmatpush.bf16.msra.mxu0 %v1521
    %1988 = vmatpush.bf16.msra.mxu0 %v1516
    %1989 = vmatpush.bf16.msra.mxu0 %v1511
    %1990 = vmatpush.bf16.msra.mxu0 %v1506
    %1991 = vmatpush.bf16.msra.mxu0 %v1501
    %1992 = vmatpush.bf16.msra.mxu0 %v1496
    %1993 = vmatpush.bf16.msra.mxu0 %v1491
    %1994 = vmatpush.bf16.msra.mxu0 %v1486
    %1995 = vmatmul.bf16.gmra.mxu0 %v560
    %v1996 = vpop.f32.mrf.mxu0
    %v1997 = vadd.f32 %v1984, %v1996
    %v1998 = vpop.f32.mrf.mxu0
    %1999 = vdwg.mxu0
    %2000 = vmatpush.bf16.msra.mxu0 %v1561
    %2001 = vmatpush.bf16.msra.mxu0 %v1556
    %2002 = vmatpush.bf16.msra.mxu0 %v1551
    %2003 = vmatpush.bf16.msra.mxu0 %v1546
    %2004 = vmatpush.bf16.msra.mxu0 %v1541
    %2005 = vmatpush.bf16.msra.mxu0 %v1536
    %2006 = vmatpush.bf16.msra.mxu0 %v1531
    %2007 = vmatpush.bf16.msra.mxu0 %v1526
    %2008 = vmatmul.bf16.gmra.mxu0 %v561
    %v2009 = vpop.f32.mrf.mxu0
    %v2010 = vadd.f32 %v1997, %v2009
    %v2011 = vpop.f32.mrf.mxu0
    %2012 = vdwg.mxu0
    %2013 = vmatpush.bf16.msra.mxu0 %v1601
    %2014 = vmatpush.bf16.msra.mxu0 %v1596
    %2015 = vmatpush.bf16.msra.mxu0 %v1591
    %2016 = vmatpush.bf16.msra.mxu0 %v1586
    %2017 = vmatpush.bf16.msra.mxu0 %v1581
    %2018 = vmatpush.bf16.msra.mxu0 %v1576
    %2019 = vmatpush.bf16.msra.mxu0 %v1571
    %2020 = vmatpush.bf16.msra.mxu0 %v1566
    %2021 = vmatmul.bf16.gmra.mxu0 %v562
    %v2022 = vpop.f32.mrf.mxu0
    %v2023 = vadd.f32 %v2010, %v2022
    %v2024 = vpop.f32.mrf.mxu0
    %2025 = vdwg.mxu0
    %2026 = vmatpush.bf16.msra.mxu0 %v1641
    %2027 = vmatpush.bf16.msra.mxu0 %v1636
    %2028 = vmatpush.bf16.msra.mxu0 %v1631
    %2029 = vmatpush.bf16.msra.mxu0 %v1626
    %2030 = vmatpush.bf16.msra.mxu0 %v1621
    %2031 = vmatpush.bf16.msra.mxu0 %v1616
    %2032 = vmatpush.bf16.msra.mxu0 %v1611
    %2033 = vmatpush.bf16.msra.mxu0 %v1606
    %2034 = vmatmul.bf16.gmra.mxu0 %v563
    %v2035 = vpop.f32.mrf.mxu0
    %v2036 = vadd.f32 %v2023, %v2035
    %v2037 = vpop.f32.mrf.mxu0
    %2038 = vdwg.mxu0
    %2039 = vmatpush.bf16.msra.mxu0 %v1482
    %2040 = vmatpush.bf16.msra.mxu0 %v1477
    %2041 = vmatpush.bf16.msra.mxu0 %v1472
    %2042 = vmatpush.bf16.msra.mxu0 %v1467
    %2043 = vmatpush.bf16.msra.mxu0 %v1462
    %2044 = vmatpush.bf16.msra.mxu0 %v1457
    %2045 = vmatpush.bf16.msra.mxu0 %v1452
    %2046 = vmatpush.bf16.msra.mxu0 %v1447
    %2047 = vmatmul.bf16.gmra.mxu0 %v559
    %v2048 = vpop.f32.mrf.mxu0
    %v2049 = vadd.f32 0.0, %v2048
    %v2050 = vpop.f32.mrf.mxu0
    %2051 = vdwg.mxu0
    %2052 = vmatpush.bf16.msra.mxu0 %v1522
    %2053 = vmatpush.bf16.msra.mxu0 %v1517
    %2054 = vmatpush.bf16.msra.mxu0 %v1512
    %2055 = vmatpush.bf16.msra.mxu0 %v1507
    %2056 = vmatpush.bf16.msra.mxu0 %v1502
    %2057 = vmatpush.bf16.msra.mxu0 %v1497
    %2058 = vmatpush.bf16.msra.mxu0 %v1492
    %2059 = vmatpush.bf16.msra.mxu0 %v1487
    %2060 = vmatmul.bf16.gmra.mxu0 %v560
    %v2061 = vpop.f32.mrf.mxu0
    %v2062 = vadd.f32 %v2049, %v2061
    %v2063 = vpop.f32.mrf.mxu0
    %2064 = vdwg.mxu0
    %2065 = vmatpush.bf16.msra.mxu0 %v1562
    %2066 = vmatpush.bf16.msra.mxu0 %v1557
    %2067 = vmatpush.bf16.msra.mxu0 %v1552
    %2068 = vmatpush.bf16.msra.mxu0 %v1547
    %2069 = vmatpush.bf16.msra.mxu0 %v1542
    %2070 = vmatpush.bf16.msra.mxu0 %v1537
    %2071 = vmatpush.bf16.msra.mxu0 %v1532
    %2072 = vmatpush.bf16.msra.mxu0 %v1527
    %2073 = vmatmul.bf16.gmra.mxu0 %v561
    %v2074 = vpop.f32.mrf.mxu0
    %v2075 = vadd.f32 %v2062, %v2074
    %v2076 = vpop.f32.mrf.mxu0
    %2077 = vdwg.mxu0
    %2078 = vmatpush.bf16.msra.mxu0 %v1602
    %2079 = vmatpush.bf16.msra.mxu0 %v1597
    %2080 = vmatpush.bf16.msra.mxu0 %v1592
    %2081 = vmatpush.bf16.msra.mxu0 %v1587
    %2082 = vmatpush.bf16.msra.mxu0 %v1582
    %2083 = vmatpush.bf16.msra.mxu0 %v1577
    %2084 = vmatpush.bf16.msra.mxu0 %v1572
    %2085 = vmatpush.bf16.msra.mxu0 %v1567
    %2086 = vmatmul.bf16.gmra.mxu0 %v562
    %v2087 = vpop.f32.mrf.mxu0
    %v2088 = vadd.f32 %v2075, %v2087
    %v2089 = vpop.f32.mrf.mxu0
    %2090 = vdwg.mxu0
    %2091 = vmatpush.bf16.msra.mxu0 %v1642
    %2092 = vmatpush.bf16.msra.mxu0 %v1637
    %2093 = vmatpush.bf16.msra.mxu0 %v1632
    %2094 = vmatpush.bf16.msra.mxu0 %v1627
    %2095 = vmatpush.bf16.msra.mxu0 %v1622
    %2096 = vmatpush.bf16.msra.mxu0 %v1617
    %2097 = vmatpush.bf16.msra.mxu0 %v1612
    %2098 = vmatpush.bf16.msra.mxu0 %v1607
    %2099 = vmatmul.bf16.gmra.mxu0 %v563
    %v2100 = vpop.f32.mrf.mxu0
    %v2101 = vadd.f32 %v2088, %v2100
    %v2102 = vpop.f32.mrf.mxu0
    %2103 = vdwg.mxu0
    %2104 = vmatpush.bf16.msra.mxu0 %v1483
    %2105 = vmatpush.bf16.msra.mxu0 %v1478
    %2106 = vmatpush.bf16.msra.mxu0 %v1473
    %2107 = vmatpush.bf16.msra.mxu0 %v1468
    %2108 = vmatpush.bf16.msra.mxu0 %v1463
    %2109 = vmatpush.bf16.msra.mxu0 %v1458
    %2110 = vmatpush.bf16.msra.mxu0 %v1453
    %2111 = vmatpush.bf16.msra.mxu0 %v1448
    %2112 = vmatmul.bf16.gmra.mxu0 %v559
    %v2113 = vpop.f32.mrf.mxu0
    %v2114 = vadd.f32 0.0, %v2113
    %v2115 = vpop.f32.mrf.mxu0
    %2116 = vdwg.mxu0
    %2117 = vmatpush.bf16.msra.mxu0 %v1523
    %2118 = vmatpush.bf16.msra.mxu0 %v1518
    %2119 = vmatpush.bf16.msra.mxu0 %v1513
    %2120 = vmatpush.bf16.msra.mxu0 %v1508
    %2121 = vmatpush.bf16.msra.mxu0 %v1503
    %2122 = vmatpush.bf16.msra.mxu0 %v1498
    %2123 = vmatpush.bf16.msra.mxu0 %v1493
    %2124 = vmatpush.bf16.msra.mxu0 %v1488
    %2125 = vmatmul.bf16.gmra.mxu0 %v560
    %v2126 = vpop.f32.mrf.mxu0
    %v2127 = vadd.f32 %v2114, %v2126
    %v2128 = vpop.f32.mrf.mxu0
    %2129 = vdwg.mxu0
    %2130 = vmatpush.bf16.msra.mxu0 %v1563
    %2131 = vmatpush.bf16.msra.mxu0 %v1558
    %2132 = vmatpush.bf16.msra.mxu0 %v1553
    %2133 = vmatpush.bf16.msra.mxu0 %v1548
    %2134 = vmatpush.bf16.msra.mxu0 %v1543
    %2135 = vmatpush.bf16.msra.mxu0 %v1538
    %2136 = vmatpush.bf16.msra.mxu0 %v1533
    %2137 = vmatpush.bf16.msra.mxu0 %v1528
    %2138 = vmatmul.bf16.gmra.mxu0 %v561
    %v2139 = vpop.f32.mrf.mxu0
    %v2140 = vadd.f32 %v2127, %v2139
    %v2141 = vpop.f32.mrf.mxu0
    %2142 = vdwg.mxu0
    %2143 = vmatpush.bf16.msra.mxu0 %v1603
    %2144 = vmatpush.bf16.msra.mxu0 %v1598
    %2145 = vmatpush.bf16.msra.mxu0 %v1593
    %2146 = vmatpush.bf16.msra.mxu0 %v1588
    %2147 = vmatpush.bf16.msra.mxu0 %v1583
    %2148 = vmatpush.bf16.msra.mxu0 %v1578
    %2149 = vmatpush.bf16.msra.mxu0 %v1573
    %2150 = vmatpush.bf16.msra.mxu0 %v1568
    %2151 = vmatmul.bf16.gmra.mxu0 %v562
    %v2152 = vpop.f32.mrf.mxu0
    %v2153 = vadd.f32 %v2140, %v2152
    %v2154 = vpop.f32.mrf.mxu0
    %2155 = vdwg.mxu0
    %2156 = vmatpush.bf16.msra.mxu0 %v1643
    %2157 = vmatpush.bf16.msra.mxu0 %v1638
    %2158 = vmatpush.bf16.msra.mxu0 %v1633
    %2159 = vmatpush.bf16.msra.mxu0 %v1628
    %2160 = vmatpush.bf16.msra.mxu0 %v1623
    %2161 = vmatpush.bf16.msra.mxu0 %v1618
    %2162 = vmatpush.bf16.msra.mxu0 %v1613
    %2163 = vmatpush.bf16.msra.mxu0 %v1608
    %2164 = vmatmul.bf16.gmra.mxu0 %v563
    %v2165 = vpop.f32.mrf.mxu0
    %v2166 = vadd.f32 %v2153, %v2165
    %v2167 = vpop.f32.mrf.mxu0
    %2168 = vdwg.mxu0
    %v2169 = vmul.f32 %v1906, %v1906
    %v2170 = vmul.f32 %v1971, %v1971
    %v2171 = vmul.f32 %v2036, %v2036
    %v2172 = vmul.f32 %v2101, %v2101
    %v2173 = vmul.f32 %v2166, %v2166
    %v2174 = vpack.c.bf16 %v2169, %v1906
    %v2175 = vpack.c.bf16 %v2170, %v1971
    %v2176 = vpack.c.bf16 %v2171, %v2036
    %v2177 = vpack.c.bf16 %v2172, %v2101
    %v2178 = vpack.c.bf16 %v2173, %v2166
    %v2179 = vld [vmem:[%s5] sm:$0xf]
    %v2180 = vld [vmem:[%s5 + $0x4] sm:$0xf]
    %v2181 = vld [vmem:[%s5 + $0x8] sm:$0xf]
    %v2182 = vld [vmem:[%s5 + $0xc] sm:$0xf]
    %v2183 = vld [vmem:[%s5 + $0x10] sm:$0xf]
    %v2184 = vld [vmem:[%s5 + $0x14] sm:$0xf]
    %v2185 = vld [vmem:[%s5 + $0x18] sm:$0xf]
    %v2186 = vld [vmem:[%s5 + $0x1c] sm:$0xf]
    %v2187 = vld [vmem:[%s5 + $0x20] sm:$0xf]
    %v2188 = vld [vmem:[%s5 + $0x24] sm:$0xf]
    %v2189 = vld [vmem:[%s5 + $0x28] sm:$0xf]
    %v2190 = vld [vmem:[%s5 + $0x2c] sm:$0xf]
    %v2191 = vld [vmem:[%s5 + $0x30] sm:$0xf]
    %v2192 = vld [vmem:[%s5 + $0x34] sm:$0xf]
    %v2193 = vld [vmem:[%s5 + $0x38] sm:$0xf]
    %v2194 = vld [vmem:[%s5 + $0x3c] sm:$0xf]
    %v2195 = vld [vmem:[%s5 + $0x40] sm:$0xf]
    %v2196 = vld [vmem:[%s5 + $0x44] sm:$0xf]
    %v2197 = vld [vmem:[%s5 + $0x48] sm:$0xf]
    %v2198 = vld [vmem:[%s5 + $0x4c] sm:$0xf]
    %v2199 = vld [vmem:[%s5 + $0x50] sm:$0xf]
    %v2200 = vld [vmem:[%s5 + $0x54] sm:$0xf]
    %v2201 = vld [vmem:[%s5 + $0x58] sm:$0xf]
    %v2202 = vld [vmem:[%s5 + $0x5c] sm:$0xf]
    %v2203 = vld [vmem:[%s5 + $0x60] sm:$0xf]
    %v2204 = vld [vmem:[%s5 + $0x64] sm:$0xf]
    %v2205 = vld [vmem:[%s5 + $0x68] sm:$0xf]
    %v2206 = vld [vmem:[%s5 + $0x6c] sm:$0xf]
    %v2207 = vld [vmem:[%s5 + $0x70] sm:$0xf]
    %v2208 = vld [vmem:[%s5 + $0x74] sm:$0xf]
    %v2209 = vld [vmem:[%s5 + $0x78] sm:$0xf]
    %v2210 = vld [vmem:[%s5 + $0x7c] sm:$0xf]
    %v2211 = vld [vmem:[%s5 + $0x80] sm:$0xf]
    %v2212 = vld [vmem:[%s5 + $0x84] sm:$0xf]
    %v2213 = vld [vmem:[%s5 + $0x88] sm:$0xf]
    %v2214 = vld [vmem:[%s5 + $0x8c] sm:$0xf]
    %v2215 = vld [vmem:[%s5 + $0x90] sm:$0xf]
    %v2216 = vld [vmem:[%s5 + $0x94] sm:$0xf]
    %v2217 = vld [vmem:[%s5 + $0x98] sm:$0xf]
    %v2218 = vld [vmem:[%s5 + $0x9c] sm:$0xf]
    %v2219 = vld [vmem:[%s5 + $0xa0] sm:$0xf]
    %v2220 = vld [vmem:[%s5 + $0xa4] sm:$0xf]
    %v2221 = vld [vmem:[%s5 + $0xa8] sm:$0xf]
    %v2222 = vld [vmem:[%s5 + $0xac] sm:$0xf]
    %v2223 = vld [vmem:[%s5 + $0xb0] sm:$0xf]
    %v2224 = vld [vmem:[%s5 + $0xb4] sm:$0xf]
    %v2225 = vld [vmem:[%s5 + $0xb8] sm:$0xf]
    %v2226 = vld [vmem:[%s5 + $0xbc] sm:$0xf]
    %v2227 = vld [vmem:[%s5 + $0xc0] sm:$0xf]
    %v2228 = vld [vmem:[%s5 + $0xc4] sm:$0xf]
    %v2229 = vld [vmem:[%s5 + $0xc8] sm:$0xf]
    %v2230 = vld [vmem:[%s5 + $0xcc] sm:$0xf]
    %v2231 = vld [vmem:[%s5 + $0xd0] sm:$0xf]
    %v2232 = vld [vmem:[%s5 + $0xd4] sm:$0xf]
    %v2233 = vld [vmem:[%s5 + $0xd8] sm:$0xf]
    %v2234 = vld [vmem:[%s5 + $0xdc] sm:$0xf]
    %v2235 = vld [vmem:[%s5 + $0xe0] sm:$0xf]
    %v2236 = vld [vmem:[%s5 + $0xe4] sm:$0xf]
    %v2237 = vld [vmem:[%s5 + $0xe8] sm:$0xf]
    %v2238 = vld [vmem:[%s5 + $0xec] sm:$0xf]
    %v2239 = vld [vmem:[%s5 + $0xf0] sm:$0xf]
    %v2240 = vld [vmem:[%s5 + $0xf4] sm:$0xf]
    %v2241 = vld [vmem:[%s5 + $0xf8] sm:$0xf]
    %v2242 = vld [vmem:[%s5 + $0xfc] sm:$0xf]
    %v2243 = vld [vmem:[%s5 + $0x100] sm:$0xf]
    %v2244 = vld [vmem:[%s5 + $0x104] sm:$0xf]
    %v2245 = vld [vmem:[%s5 + $0x108] sm:$0xf]
    %v2246 = vld [vmem:[%s5 + $0x10c] sm:$0xf]
    %v2247 = vld [vmem:[%s5 + $0x110] sm:$0xf]
    %v2248 = vld [vmem:[%s5 + $0x114] sm:$0xf]
    %v2249 = vld [vmem:[%s5 + $0x118] sm:$0xf]
    %v2250 = vld [vmem:[%s5 + $0x11c] sm:$0xf]
    %v2251 = vld [vmem:[%s5 + $0x120] sm:$0xf]
    %v2252 = vld [vmem:[%s5 + $0x124] sm:$0xf]
    %v2253 = vld [vmem:[%s5 + $0x128] sm:$0xf]
    %v2254 = vld [vmem:[%s5 + $0x12c] sm:$0xf]
    %v2255 = vld [vmem:[%s5 + $0x130] sm:$0xf]
    %v2256 = vld [vmem:[%s5 + $0x134] sm:$0xf]
    %v2257 = vld [vmem:[%s5 + $0x138] sm:$0xf]
    %v2258 = vld [vmem:[%s5 + $0x13c] sm:$0xf]
    %v2339 = vunpack.c.l.b16 %v2179
    %v2340 = vunpack.c.l.b16 %v2180
    %v2341 = vunpack.c.l.b16 %v2181
    %v2342 = vunpack.c.l.b16 %v2182
    %v2343 = vunpack.c.l.b16 %v2183
    %v2344 = vunpack.c.l.b16 %v2184
    %v2345 = vunpack.c.l.b16 %v2185
    %v2346 = vunpack.c.l.b16 %v2186
    %v2347 = vunpack.c.l.b16 %v2187
    %v2348 = vunpack.c.l.b16 %v2188
    %v2349 = vunpack.c.l.b16 %v2189
    %v2350 = vunpack.c.l.b16 %v2190
    %v2351 = vunpack.c.l.b16 %v2191
    %v2352 = vunpack.c.l.b16 %v2192
    %v2353 = vunpack.c.l.b16 %v2193
    %v2354 = vunpack.c.l.b16 %v2194
    %v2355 = vunpack.c.l.b16 %v2195
    %v2356 = vunpack.c.l.b16 %v2196
    %v2357 = vunpack.c.l.b16 %v2197
    %v2358 = vunpack.c.l.b16 %v2198
    %v2359 = vunpack.c.l.b16 %v2199
    %v2360 = vunpack.c.l.b16 %v2200
    %v2361 = vunpack.c.l.b16 %v2201
    %v2362 = vunpack.c.l.b16 %v2202
    %v2363 = vunpack.c.l.b16 %v2203
    %v2364 = vunpack.c.l.b16 %v2204
    %v2365 = vunpack.c.l.b16 %v2205
    %v2366 = vunpack.c.l.b16 %v2206
    %v2367 = vunpack.c.l.b16 %v2207
    %v2368 = vunpack.c.l.b16 %v2208
    %v2369 = vunpack.c.l.b16 %v2209
    %v2370 = vunpack.c.l.b16 %v2210
    %v2371 = vunpack.c.l.b16 %v2211
    %v2372 = vunpack.c.l.b16 %v2212
    %v2373 = vunpack.c.l.b16 %v2213
    %v2374 = vunpack.c.l.b16 %v2214
    %v2375 = vunpack.c.l.b16 %v2215
    %v2376 = vunpack.c.l.b16 %v2216
    %v2377 = vunpack.c.l.b16 %v2217
    %v2378 = vunpack.c.l.b16 %v2218
    %v2379 = vunpack.c.l.b16 %v2219
    %v2380 = vunpack.c.l.b16 %v2220
    %v2381 = vunpack.c.l.b16 %v2221
    %v2382 = vunpack.c.l.b16 %v2222
    %v2383 = vunpack.c.l.b16 %v2223
    %v2384 = vunpack.c.l.b16 %v2224
    %v2385 = vunpack.c.l.b16 %v2225
    %v2386 = vunpack.c.l.b16 %v2226
    %v2387 = vunpack.c.l.b16 %v2227
    %v2388 = vunpack.c.l.b16 %v2228
    %v2389 = vunpack.c.l.b16 %v2229
    %v2390 = vunpack.c.l.b16 %v2230
    %v2391 = vunpack.c.l.b16 %v2231
    %v2392 = vunpack.c.l.b16 %v2232
    %v2393 = vunpack.c.l.b16 %v2233
    %v2394 = vunpack.c.l.b16 %v2234
    %v2395 = vunpack.c.l.b16 %v2235
    %v2396 = vunpack.c.l.b16 %v2236
    %v2397 = vunpack.c.l.b16 %v2237
    %v2398 = vunpack.c.l.b16 %v2238
    %v2399 = vunpack.c.l.b16 %v2239
    %v2400 = vunpack.c.l.b16 %v2240
    %v2401 = vunpack.c.l.b16 %v2241
    %v2402 = vunpack.c.l.b16 %v2242
    %v2403 = vunpack.c.l.b16 %v2243
    %v2404 = vunpack.c.l.b16 %v2244
    %v2405 = vunpack.c.l.b16 %v2245
    %v2406 = vunpack.c.l.b16 %v2246
    %v2407 = vunpack.c.l.b16 %v2247
    %v2408 = vunpack.c.l.b16 %v2248
    %v2409 = vunpack.c.l.b16 %v2249
    %v2410 = vunpack.c.l.b16 %v2250
    %v2411 = vunpack.c.l.b16 %v2251
    %v2412 = vunpack.c.l.b16 %v2252
    %v2413 = vunpack.c.l.b16 %v2253
    %v2414 = vunpack.c.l.b16 %v2254
    %v2415 = vunpack.c.l.b16 %v2255
    %v2416 = vunpack.c.l.b16 %v2256
    %v2417 = vunpack.c.l.b16 %v2257
    %v2418 = vunpack.c.l.b16 %v2258
    %v2419 = vpack.c.b16 %v2340, %v2339
    %v2420 = vpack.c.b16 %v2342, %v2341
    %v2421 = vpack.c.b16 %v2344, %v2343
    %v2422 = vpack.c.b16 %v2346, %v2345
    %v2423 = vpack.c.b16 %v2348, %v2347
    %v2424 = vpack.c.b16 %v2350, %v2349
    %v2425 = vpack.c.b16 %v2352, %v2351
    %v2426 = vpack.c.b16 %v2354, %v2353
    %v2427 = vpack.c.b16 %v2356, %v2355
    %v2428 = vpack.c.b16 %v2358, %v2357
    %v2429 = vpack.c.b16 %v2360, %v2359
    %v2430 = vpack.c.b16 %v2362, %v2361
    %v2431 = vpack.c.b16 %v2364, %v2363
    %v2432 = vpack.c.b16 %v2366, %v2365
    %v2433 = vpack.c.b16 %v2368, %v2367
    %v2434 = vpack.c.b16 %v2370, %v2369
    %v2435 = vpack.c.b16 %v2372, %v2371
    %v2436 = vpack.c.b16 %v2374, %v2373
    %v2437 = vpack.c.b16 %v2376, %v2375
    %v2438 = vpack.c.b16 %v2378, %v2377
    %v2439 = vpack.c.b16 %v2380, %v2379
    %v2440 = vpack.c.b16 %v2382, %v2381
    %v2441 = vpack.c.b16 %v2384, %v2383
    %v2442 = vpack.c.b16 %v2386, %v2385
    %v2443 = vpack.c.b16 %v2388, %v2387
    %v2444 = vpack.c.b16 %v2390, %v2389
    %v2445 = vpack.c.b16 %v2392, %v2391
    %v2446 = vpack.c.b16 %v2394, %v2393
    %v2447 = vpack.c.b16 %v2396, %v2395
    %v2448 = vpack.c.b16 %v2398, %v2397
    %v2449 = vpack.c.b16 %v2400, %v2399
    %v2450 = vpack.c.b16 %v2402, %v2401
    %v2451 = vpack.c.b16 %v2404, %v2403
    %v2452 = vpack.c.b16 %v2406, %v2405
    %v2453 = vpack.c.b16 %v2408, %v2407
    %v2454 = vpack.c.b16 %v2410, %v2409
    %v2455 = vpack.c.b16 %v2412, %v2411
    %v2456 = vpack.c.b16 %v2414, %v2413
    %v2457 = vpack.c.b16 %v2416, %v2415
    %v2458 = vpack.c.b16 %v2418, %v2417
    %2499 = vmatpush.bf16.msra.mxu0 %v2426
    %2500 = vmatpush.bf16.msra.mxu0 %v2425
    %2501 = vmatpush.bf16.msra.mxu0 %v2424
    %2502 = vmatpush.bf16.msra.mxu0 %v2423
    %2503 = vmatpush.bf16.msra.mxu0 %v2422
    %2504 = vmatpush.bf16.msra.mxu0 %v2421
    %2505 = vmatpush.bf16.msra.mxu0 %v2420
    %2506 = vmatpush.bf16.msra.mxu0 %v2419
    %2507 = vmatmul.bf16.gmra.mxu0 %v2174
    %v2508 = vpop.f32.mrf.mxu0
    %v2509 = vadd.f32 0.0, %v2508
    %v2510 = vpop.f32.mrf.mxu0
    %v2511 = vadd.f32 0.0, %v2510
    %2512 = vdwg.mxu0
    %2513 = vmatpush.bf16.msra.mxu0 %v2434
    %2514 = vmatpush.bf16.msra.mxu0 %v2433
    %2515 = vmatpush.bf16.msra.mxu0 %v2432
    %2516 = vmatpush.bf16.msra.mxu0 %v2431
    %2517 = vmatpush.bf16.msra.mxu0 %v2430
    %2518 = vmatpush.bf16.msra.mxu0 %v2429
    %2519 = vmatpush.bf16.msra.mxu0 %v2428
    %2520 = vmatpush.bf16.msra.mxu0 %v2427
    %2521 = vmatmul.bf16.gmra.mxu0 %v2175
    %v2522 = vpop.f32.mrf.mxu0
    %v2523 = vadd.f32 %v2509, %v2522
    %v2524 = vpop.f32.mrf.mxu0
    %v2525 = vadd.f32 %v2511, %v2524
    %2526 = vdwg.mxu0
    %2527 = vmatpush.bf16.msra.mxu0 %v2442
    %2528 = vmatpush.bf16.msra.mxu0 %v2441
    %2529 = vmatpush.bf16.msra.mxu0 %v2440
    %2530 = vmatpush.bf16.msra.mxu0 %v2439
    %2531 = vmatpush.bf16.msra.mxu0 %v2438
    %2532 = vmatpush.bf16.msra.mxu0 %v2437
    %2533 = vmatpush.bf16.msra.mxu0 %v2436
    %2534 = vmatpush.bf16.msra.mxu0 %v2435
    %2535 = vmatmul.bf16.gmra.mxu0 %v2176
    %v2536 = vpop.f32.mrf.mxu0
    %v2537 = vadd.f32 %v2523, %v2536
    %v2538 = vpop.f32.mrf.mxu0
    %v2539 = vadd.f32 %v2525, %v2538
    %2540 = vdwg.mxu0
    %2541 = vmatpush.bf16.msra.mxu0 %v2450
    %2542 = vmatpush.bf16.msra.mxu0 %v2449
    %2543 = vmatpush.bf16.msra.mxu0 %v2448
    %2544 = vmatpush.bf16.msra.mxu0 %v2447
    %2545 = vmatpush.bf16.msra.mxu0 %v2446
    %2546 = vmatpush.bf16.msra.mxu0 %v2445
    %2547 = vmatpush.bf16.msra.mxu0 %v2444
    %2548 = vmatpush.bf16.msra.mxu0 %v2443
    %2549 = vmatmul.bf16.gmra.mxu0 %v2177
    %v2550 = vpop.f32.mrf.mxu0
    %v2551 = vadd.f32 %v2537, %v2550
    %v2552 = vpop.f32.mrf.mxu0
    %v2553 = vadd.f32 %v2539, %v2552
    %2554 = vdwg.mxu0
    %2555 = vmatpush.bf16.msra.mxu0 %v2458
    %2556 = vmatpush.bf16.msra.mxu0 %v2457
    %2557 = vmatpush.bf16.msra.mxu0 %v2456
    %2558 = vmatpush.bf16.msra.mxu0 %v2455
    %2559 = vmatpush.bf16.msra.mxu0 %v2454
    %2560 = vmatpush.bf16.msra.mxu0 %v2453
    %2561 = vmatpush.bf16.msra.mxu0 %v2452
    %2562 = vmatpush.bf16.msra.mxu0 %v2451
    %2563 = vmatmul.bf16.gmra.mxu0 %v2178
    %v2564 = vpop.f32.mrf.mxu0
    %v2565 = vadd.f32 %v2551, %v2564
    %v2566 = vpop.f32.mrf.mxu0
    %v2567 = vadd.f32 %v2553, %v2566
    %2568 = vdwg.mxu0
    %v2569 = vperm.slane %v64, 2
    %v2570 = vmul.f32 %v2565, %v2569
    %v2571 = vmul.f32 %v2567, %v2569
    %v2572 = vmul.f32 %v2570, %v2570
    %v2573 = vsub.f32 %v2571, %v2572
    %v2574 = vmax.f32 %v2573, 0.0
    %v2575 = vadd.f32 %v2574, 1e-05
    %v2576 = vrsqrt.pop %v2575
    %v2577 = vmul.f32 %v2576, %v2575
    %v2578 = vmul.f32 %v2577, %v2576
    %v2579 = vmul.f32 0.5, %v2578
    %v2580 = vsub.f32 1.5, %v2579
    %v2581 = vmul.f32 %v2576, %v2580
    %vm2582 = vweird.f32 %v2575
    %vm2583 = vweird.f32 %v2576
    %vm2584 = vmor %vm2582, %vm2583
    %v2585 = vsel %vm2584, %v2576, %v2581
    %v2586 = vperm.slane %v64, 0
    %v2587 = vmul.f32 %v2585, %v2586
    %v2588 = vmul.f32 %v2570, %v2587
    %v2589 = vperm.slane %v64, 1
    %v2590 = vsub.f32 %v2589, %v2588
    %v2591 = vpack.c.bf16 %v2590, %v2587
    %v2592 = vld [vmem:[%s6] sm:$0xff]
    %v2593 = vld [vmem:[%s6 + $0x8] sm:$0xff]
    %v2594 = vld [vmem:[%s6 + $0x10] sm:$0xf]
    %v2595 = vld [vmem:[%s6 + $0x14] sm:$0xff]
    %v2596 = vld [vmem:[%s6 + $0x1c] sm:$0xff]
    %v2597 = vld [vmem:[%s6 + $0x24] sm:$0xf]
    %v2598 = vld [vmem:[%s6 + $0x28] sm:$0xff]
    %v2599 = vld [vmem:[%s6 + $0x30] sm:$0xff]
    %v2600 = vld [vmem:[%s6 + $0x38] sm:$0xf]
    %v2601 = vld [vmem:[%s6 + $0x3c] sm:$0xff]
    %v2602 = vld [vmem:[%s6 + $0x44] sm:$0xff]
    %v2603 = vld [vmem:[%s6 + $0x4c] sm:$0xf]
    %v2616 = vunpack.c.l.b16 %v2592
    %v2617 = vunpack.c.h.b16 %v2592
    %v2618 = vunpack.c.l.b16 %v2593
    %v2619 = vunpack.c.h.b16 %v2593
    %v2620 = vunpack.c.l.b16 %v2594
    %v2621 = vunpack.c.l.b16 %v2595
    %v2622 = vunpack.c.h.b16 %v2595
    %v2623 = vunpack.c.l.b16 %v2596
    %v2624 = vunpack.c.h.b16 %v2596
    %v2625 = vunpack.c.l.b16 %v2597
    %v2626 = vunpack.c.l.b16 %v2598
    %v2627 = vunpack.c.h.b16 %v2598
    %v2628 = vunpack.c.l.b16 %v2599
    %v2629 = vunpack.c.h.b16 %v2599
    %v2630 = vunpack.c.l.b16 %v2600
    %v2631 = vunpack.c.l.b16 %v2601
    %v2632 = vunpack.c.h.b16 %v2601
    %v2633 = vunpack.c.l.b16 %v2602
    %v2634 = vunpack.c.h.b16 %v2602
    %v2635 = vunpack.c.l.b16 %v2603
    %v2636 = vpack.c.b16 %v2621, %v2616
    %v2637 = vpack.c.b16 %v2622, %v2617
    %v2638 = vpack.c.b16 %v2623, %v2618
    %v2639 = vpack.c.b16 %v2624, %v2619
    %v2640 = vpack.c.b16 %v2625, %v2620
    %v2641 = vpack.c.b16 %v2631, %v2626
    %v2642 = vpack.c.b16 %v2632, %v2627
    %v2643 = vpack.c.b16 %v2633, %v2628
    %v2644 = vpack.c.b16 %v2634, %v2629
    %v2645 = vpack.c.b16 %v2635, %v2630
    %v2657 = vsel %vm415, %v2591, 0
    %2659 = vmatpush.bf16.msra.mxu0 0
    %2660 = vmatpush.bf16.msra.mxu0 0
    %2661 = vmatpush.bf16.msra.mxu0 0
    %2662 = vmatpush.bf16.msra.mxu0 0
    %2663 = vmatpush.bf16.msra.mxu0 0
    %2664 = vmatpush.bf16.msra.mxu0 0
    %2665 = vmatpush.bf16.msra.mxu0 %v2641
    %2666 = vmatpush.bf16.msra.mxu0 %v2636
    %2667 = vmatmul.bf16.gmra.mxu0 %v2657
    %v2668 = vpop.f32.mrf.mxu0
    %v2669 = vadd.f32 0.0, %v2668
    %v2670 = vpop.f32.mrf.mxu0
    %v2671 = vadd.f32 0.0, %v2670
    %2672 = vdwg.mxu0
    %2673 = vmatpush.bf16.msra.mxu0 0
    %2674 = vmatpush.bf16.msra.mxu0 0
    %2675 = vmatpush.bf16.msra.mxu0 0
    %2676 = vmatpush.bf16.msra.mxu0 0
    %2677 = vmatpush.bf16.msra.mxu0 0
    %2678 = vmatpush.bf16.msra.mxu0 0
    %2679 = vmatpush.bf16.msra.mxu0 %v2642
    %2680 = vmatpush.bf16.msra.mxu0 %v2637
    %2681 = vmatmul.bf16.gmra.mxu0 %v2657
    %v2682 = vpop.f32.mrf.mxu0
    %v2683 = vadd.f32 0.0, %v2682
    %v2684 = vpop.f32.mrf.mxu0
    %v2685 = vadd.f32 0.0, %v2684
    %2686 = vdwg.mxu0
    %2687 = vmatpush.bf16.msra.mxu0 0
    %2688 = vmatpush.bf16.msra.mxu0 0
    %2689 = vmatpush.bf16.msra.mxu0 0
    %2690 = vmatpush.bf16.msra.mxu0 0
    %2691 = vmatpush.bf16.msra.mxu0 0
    %2692 = vmatpush.bf16.msra.mxu0 0
    %2693 = vmatpush.bf16.msra.mxu0 %v2643
    %2694 = vmatpush.bf16.msra.mxu0 %v2638
    %2695 = vmatmul.bf16.gmra.mxu0 %v2657
    %v2696 = vpop.f32.mrf.mxu0
    %v2697 = vadd.f32 0.0, %v2696
    %v2698 = vpop.f32.mrf.mxu0
    %v2699 = vadd.f32 0.0, %v2698
    %2700 = vdwg.mxu0
    %2701 = vmatpush.bf16.msra.mxu0 0
    %2702 = vmatpush.bf16.msra.mxu0 0
    %2703 = vmatpush.bf16.msra.mxu0 0
    %2704 = vmatpush.bf16.msra.mxu0 0
    %2705 = vmatpush.bf16.msra.mxu0 0
    %2706 = vmatpush.bf16.msra.mxu0 0
    %2707 = vmatpush.bf16.msra.mxu0 %v2644
    %2708 = vmatpush.bf16.msra.mxu0 %v2639
    %2709 = vmatmul.bf16.gmra.mxu0 %v2657
    %v2710 = vpop.f32.mrf.mxu0
    %v2711 = vadd.f32 0.0, %v2710
    %v2712 = vpop.f32.mrf.mxu0
    %v2713 = vadd.f32 0.0, %v2712
    %2714 = vdwg.mxu0
    %2715 = vmatpush.bf16.msra.mxu0 0
    %2716 = vmatpush.bf16.msra.mxu0 0
    %2717 = vmatpush.bf16.msra.mxu0 0
    %2718 = vmatpush.bf16.msra.mxu0 0
    %2719 = vmatpush.bf16.msra.mxu0 0
    %2720 = vmatpush.bf16.msra.mxu0 0
    %2721 = vmatpush.bf16.msra.mxu0 %v2645
    %2722 = vmatpush.bf16.msra.mxu0 %v2640
    %2723 = vmatmul.bf16.gmra.mxu0 %v2657
    %v2724 = vpop.f32.mrf.mxu0
    %v2725 = vadd.f32 0.0, %v2724
    %v2726 = vpop.f32.mrf.mxu0
    %v2727 = vadd.f32 0.0, %v2726
    %2728 = vdwg.mxu0
    %v2729 = vmul.f32 %v1906, %v2669
    %v2730 = vmul.f32 %v1971, %v2683
    %v2731 = vmul.f32 %v2036, %v2697
    %v2732 = vmul.f32 %v2101, %v2711
    %v2733 = vmul.f32 %v2166, %v2725
    %v2734 = vadd.f32 %v2729, %v2671
    %v2735 = vadd.f32 %v2730, %v2685
    %v2736 = vadd.f32 %v2731, %v2699
    %v2737 = vadd.f32 %v2732, %v2713
    %v2738 = vadd.f32 %v2733, %v2727
    %v2739 = vmul.f32 %v2734, 0.2
    %v2740 = vmul.f32 %v2735, 0.2
    %v2741 = vmul.f32 %v2736, 0.2
    %v2742 = vmul.f32 %v2737, 0.2
    %v2743 = vmul.f32 %v2738, 0.2
    %v2744 = vmax.f32 %v2734, %v2739
    %v2745 = vmax.f32 %v2735, %v2740
    %v2746 = vmax.f32 %v2736, %v2741
    %v2747 = vmax.f32 %v2737, %v2742
    %v2748 = vmax.f32 %v2738, %v2743
    %v2749 = vpack.c.bf16 %v2744, %v2744
    %v2750 = vpack.c.bf16 %v2745, %v2745
    %v2751 = vpack.c.bf16 %v2746, %v2746
    %v2752 = vpack.c.bf16 %v2747, %v2747
    %v2753 = vpack.c.bf16 %v2748, %v2748
    %v2754 = vld [vmem:[%s4] sm:$0xf]
    %v2755 = vld [vmem:[%s4 + $0x4] sm:$0xf]
    %v2756 = vld [vmem:[%s4 + $0x8] sm:$0xf]
    %v2757 = vld [vmem:[%s4 + $0xc] sm:$0xf]
    %v2758 = vld [vmem:[%s4 + $0x10] sm:$0xf]
    %v2759 = vld [vmem:[%s4 + $0x14] sm:$0xf]
    %v2760 = vld [vmem:[%s4 + $0x18] sm:$0xf]
    %v2761 = vld [vmem:[%s4 + $0x1c] sm:$0xf]
    %v2762 = vld [vmem:[%s4 + $0x20] sm:$0xf]
    %v2763 = vld [vmem:[%s4 + $0x24] sm:$0xf]
    %v2764 = vld [vmem:[%s4 + $0x28] sm:$0xf]
    %v2765 = vld [vmem:[%s4 + $0x2c] sm:$0xf]
    %v2766 = vld [vmem:[%s4 + $0x30] sm:$0xf]
    %v2767 = vld [vmem:[%s4 + $0x34] sm:$0xf]
    %v2768 = vld [vmem:[%s4 + $0x38] sm:$0xf]
    %v2769 = vld [vmem:[%s4 + $0x3c] sm:$0xf]
    %v2770 = vld [vmem:[%s4 + $0x40] sm:$0xf]
    %v2771 = vld [vmem:[%s4 + $0x44] sm:$0xf]
    %v2772 = vld [vmem:[%s4 + $0x48] sm:$0xf]
    %v2773 = vld [vmem:[%s4 + $0x4c] sm:$0xf]
    %v2774 = vld [vmem:[%s4 + $0x50] sm:$0xf]
    %v2775 = vld [vmem:[%s4 + $0x54] sm:$0xf]
    %v2776 = vld [vmem:[%s4 + $0x58] sm:$0xf]
    %v2777 = vld [vmem:[%s4 + $0x5c] sm:$0xf]
    %v2778 = vld [vmem:[%s4 + $0x60] sm:$0xf]
    %v2779 = vld [vmem:[%s4 + $0x64] sm:$0xf]
    %v2780 = vld [vmem:[%s4 + $0x68] sm:$0xf]
    %v2781 = vld [vmem:[%s4 + $0x6c] sm:$0xf]
    %v2782 = vld [vmem:[%s4 + $0x70] sm:$0xf]
    %v2783 = vld [vmem:[%s4 + $0x74] sm:$0xf]
    %v2784 = vld [vmem:[%s4 + $0x78] sm:$0xf]
    %v2785 = vld [vmem:[%s4 + $0x7c] sm:$0xf]
    %v2786 = vld [vmem:[%s4 + $0x80] sm:$0xf]
    %v2787 = vld [vmem:[%s4 + $0x84] sm:$0xf]
    %v2788 = vld [vmem:[%s4 + $0x88] sm:$0xf]
    %v2789 = vld [vmem:[%s4 + $0x8c] sm:$0xf]
    %v2790 = vld [vmem:[%s4 + $0x90] sm:$0xf]
    %v2791 = vld [vmem:[%s4 + $0x94] sm:$0xf]
    %v2792 = vld [vmem:[%s4 + $0x98] sm:$0xf]
    %v2793 = vld [vmem:[%s4 + $0x9c] sm:$0xf]
    %v2794 = vld [vmem:[%s4 + $0xa0] sm:$0xf]
    %v2795 = vld [vmem:[%s4 + $0xa4] sm:$0xf]
    %v2796 = vld [vmem:[%s4 + $0xa8] sm:$0xf]
    %v2797 = vld [vmem:[%s4 + $0xac] sm:$0xf]
    %v2798 = vld [vmem:[%s4 + $0xb0] sm:$0xf]
    %v2799 = vld [vmem:[%s4 + $0xb4] sm:$0xf]
    %v2800 = vld [vmem:[%s4 + $0xb8] sm:$0xf]
    %v2801 = vld [vmem:[%s4 + $0xbc] sm:$0xf]
    %v2802 = vld [vmem:[%s4 + $0xc0] sm:$0xf]
    %v2803 = vld [vmem:[%s4 + $0xc4] sm:$0xf]
    %v2804 = vld [vmem:[%s4 + $0xc8] sm:$0xf]
    %v2805 = vld [vmem:[%s4 + $0xcc] sm:$0xf]
    %v2806 = vld [vmem:[%s4 + $0xd0] sm:$0xf]
    %v2807 = vld [vmem:[%s4 + $0xd4] sm:$0xf]
    %v2808 = vld [vmem:[%s4 + $0xd8] sm:$0xf]
    %v2809 = vld [vmem:[%s4 + $0xdc] sm:$0xf]
    %v2810 = vld [vmem:[%s4 + $0xe0] sm:$0xf]
    %v2811 = vld [vmem:[%s4 + $0xe4] sm:$0xf]
    %v2812 = vld [vmem:[%s4 + $0xe8] sm:$0xf]
    %v2813 = vld [vmem:[%s4 + $0xec] sm:$0xf]
    %v2814 = vld [vmem:[%s4 + $0xf0] sm:$0xf]
    %v2815 = vld [vmem:[%s4 + $0xf4] sm:$0xf]
    %v2816 = vld [vmem:[%s4 + $0xf8] sm:$0xf]
    %v2817 = vld [vmem:[%s4 + $0xfc] sm:$0xf]
    %v2818 = vld [vmem:[%s4 + $0x100] sm:$0xf]
    %v2819 = vld [vmem:[%s4 + $0x104] sm:$0xf]
    %v2820 = vld [vmem:[%s4 + $0x108] sm:$0xf]
    %v2821 = vld [vmem:[%s4 + $0x10c] sm:$0xf]
    %v2822 = vld [vmem:[%s4 + $0x110] sm:$0xf]
    %v2823 = vld [vmem:[%s4 + $0x114] sm:$0xf]
    %v2824 = vld [vmem:[%s4 + $0x118] sm:$0xf]
    %v2825 = vld [vmem:[%s4 + $0x11c] sm:$0xf]
    %v2826 = vld [vmem:[%s4 + $0x120] sm:$0xf]
    %v2827 = vld [vmem:[%s4 + $0x124] sm:$0xf]
    %v2828 = vld [vmem:[%s4 + $0x128] sm:$0xf]
    %v2829 = vld [vmem:[%s4 + $0x12c] sm:$0xf]
    %v2830 = vld [vmem:[%s4 + $0x130] sm:$0xf]
    %v2831 = vld [vmem:[%s4 + $0x134] sm:$0xf]
    %v2832 = vld [vmem:[%s4 + $0x138] sm:$0xf]
    %v2833 = vld [vmem:[%s4 + $0x13c] sm:$0xf]
    %v2914 = vunpack.c.l.b16 %v2754
    %v2915 = vunpack.c.l.b16 %v2755
    %v2916 = vunpack.c.l.b16 %v2756
    %v2917 = vunpack.c.l.b16 %v2757
    %v2918 = vunpack.c.l.b16 %v2758
    %v2919 = vunpack.c.l.b16 %v2759
    %v2920 = vunpack.c.l.b16 %v2760
    %v2921 = vunpack.c.l.b16 %v2761
    %v2922 = vunpack.c.l.b16 %v2762
    %v2923 = vunpack.c.l.b16 %v2763
    %v2924 = vunpack.c.l.b16 %v2764
    %v2925 = vunpack.c.l.b16 %v2765
    %v2926 = vunpack.c.l.b16 %v2766
    %v2927 = vunpack.c.l.b16 %v2767
    %v2928 = vunpack.c.l.b16 %v2768
    %v2929 = vunpack.c.l.b16 %v2769
    %v2930 = vunpack.c.l.b16 %v2770
    %v2931 = vunpack.c.l.b16 %v2771
    %v2932 = vunpack.c.l.b16 %v2772
    %v2933 = vunpack.c.l.b16 %v2773
    %v2934 = vunpack.c.l.b16 %v2774
    %v2935 = vunpack.c.l.b16 %v2775
    %v2936 = vunpack.c.l.b16 %v2776
    %v2937 = vunpack.c.l.b16 %v2777
    %v2938 = vunpack.c.l.b16 %v2778
    %v2939 = vunpack.c.l.b16 %v2779
    %v2940 = vunpack.c.l.b16 %v2780
    %v2941 = vunpack.c.l.b16 %v2781
    %v2942 = vunpack.c.l.b16 %v2782
    %v2943 = vunpack.c.l.b16 %v2783
    %v2944 = vunpack.c.l.b16 %v2784
    %v2945 = vunpack.c.l.b16 %v2785
    %v2946 = vunpack.c.l.b16 %v2786
    %v2947 = vunpack.c.l.b16 %v2787
    %v2948 = vunpack.c.l.b16 %v2788
    %v2949 = vunpack.c.l.b16 %v2789
    %v2950 = vunpack.c.l.b16 %v2790
    %v2951 = vunpack.c.l.b16 %v2791
    %v2952 = vunpack.c.l.b16 %v2792
    %v2953 = vunpack.c.l.b16 %v2793
    %v2954 = vunpack.c.l.b16 %v2794
    %v2955 = vunpack.c.l.b16 %v2795
    %v2956 = vunpack.c.l.b16 %v2796
    %v2957 = vunpack.c.l.b16 %v2797
    %v2958 = vunpack.c.l.b16 %v2798
    %v2959 = vunpack.c.l.b16 %v2799
    %v2960 = vunpack.c.l.b16 %v2800
    %v2961 = vunpack.c.l.b16 %v2801
    %v2962 = vunpack.c.l.b16 %v2802
    %v2963 = vunpack.c.l.b16 %v2803
    %v2964 = vunpack.c.l.b16 %v2804
    %v2965 = vunpack.c.l.b16 %v2805
    %v2966 = vunpack.c.l.b16 %v2806
    %v2967 = vunpack.c.l.b16 %v2807
    %v2968 = vunpack.c.l.b16 %v2808
    %v2969 = vunpack.c.l.b16 %v2809
    %v2970 = vunpack.c.l.b16 %v2810
    %v2971 = vunpack.c.l.b16 %v2811
    %v2972 = vunpack.c.l.b16 %v2812
    %v2973 = vunpack.c.l.b16 %v2813
    %v2974 = vunpack.c.l.b16 %v2814
    %v2975 = vunpack.c.l.b16 %v2815
    %v2976 = vunpack.c.l.b16 %v2816
    %v2977 = vunpack.c.l.b16 %v2817
    %v2978 = vunpack.c.l.b16 %v2818
    %v2979 = vunpack.c.l.b16 %v2819
    %v2980 = vunpack.c.l.b16 %v2820
    %v2981 = vunpack.c.l.b16 %v2821
    %v2982 = vunpack.c.l.b16 %v2822
    %v2983 = vunpack.c.l.b16 %v2823
    %v2984 = vunpack.c.l.b16 %v2824
    %v2985 = vunpack.c.l.b16 %v2825
    %v2986 = vunpack.c.l.b16 %v2826
    %v2987 = vunpack.c.l.b16 %v2827
    %v2988 = vunpack.c.l.b16 %v2828
    %v2989 = vunpack.c.l.b16 %v2829
    %v2990 = vunpack.c.l.b16 %v2830
    %v2991 = vunpack.c.l.b16 %v2831
    %v2992 = vunpack.c.l.b16 %v2832
    %v2993 = vunpack.c.l.b16 %v2833
    %v2994 = vpack.c.b16 %v2915, %v2914
    %v2995 = vpack.c.b16 %v2917, %v2916
    %v2996 = vpack.c.b16 %v2919, %v2918
    %v2997 = vpack.c.b16 %v2921, %v2920
    %v2998 = vpack.c.b16 %v2923, %v2922
    %v2999 = vpack.c.b16 %v2925, %v2924
    %v3000 = vpack.c.b16 %v2927, %v2926
    %v3001 = vpack.c.b16 %v2929, %v2928
    %v3002 = vpack.c.b16 %v2931, %v2930
    %v3003 = vpack.c.b16 %v2933, %v2932
    %v3004 = vpack.c.b16 %v2935, %v2934
    %v3005 = vpack.c.b16 %v2937, %v2936
    %v3006 = vpack.c.b16 %v2939, %v2938
    %v3007 = vpack.c.b16 %v2941, %v2940
    %v3008 = vpack.c.b16 %v2943, %v2942
    %v3009 = vpack.c.b16 %v2945, %v2944
    %v3010 = vpack.c.b16 %v2947, %v2946
    %v3011 = vpack.c.b16 %v2949, %v2948
    %v3012 = vpack.c.b16 %v2951, %v2950
    %v3013 = vpack.c.b16 %v2953, %v2952
    %v3014 = vpack.c.b16 %v2955, %v2954
    %v3015 = vpack.c.b16 %v2957, %v2956
    %v3016 = vpack.c.b16 %v2959, %v2958
    %v3017 = vpack.c.b16 %v2961, %v2960
    %v3018 = vpack.c.b16 %v2963, %v2962
    %v3019 = vpack.c.b16 %v2965, %v2964
    %v3020 = vpack.c.b16 %v2967, %v2966
    %v3021 = vpack.c.b16 %v2969, %v2968
    %v3022 = vpack.c.b16 %v2971, %v2970
    %v3023 = vpack.c.b16 %v2973, %v2972
    %v3024 = vpack.c.b16 %v2975, %v2974
    %v3025 = vpack.c.b16 %v2977, %v2976
    %v3026 = vpack.c.b16 %v2979, %v2978
    %v3027 = vpack.c.b16 %v2981, %v2980
    %v3028 = vpack.c.b16 %v2983, %v2982
    %v3029 = vpack.c.b16 %v2985, %v2984
    %v3030 = vpack.c.b16 %v2987, %v2986
    %v3031 = vpack.c.b16 %v2989, %v2988
    %v3032 = vpack.c.b16 %v2991, %v2990
    %v3033 = vpack.c.b16 %v2993, %v2992
    %3074 = vmatpush.bf16.msra.mxu0 %v3001
    %3075 = vmatpush.bf16.msra.mxu0 %v3000
    %3076 = vmatpush.bf16.msra.mxu0 %v2999
    %3077 = vmatpush.bf16.msra.mxu0 %v2998
    %3078 = vmatpush.bf16.msra.mxu0 %v2997
    %3079 = vmatpush.bf16.msra.mxu0 %v2996
    %3080 = vmatpush.bf16.msra.mxu0 %v2995
    %3081 = vmatpush.bf16.msra.mxu0 %v2994
    %3082 = vmatmul.bf16.gmra.mxu0 %v2749
    %v3083 = vpop.f32.mrf.mxu0
    %v3084 = vadd.f32 0.0, %v3083
    %v3085 = vpop.f32.mrf.mxu0
    %3086 = vdwg.mxu0
    %3087 = vmatpush.bf16.msra.mxu0 %v3009
    %3088 = vmatpush.bf16.msra.mxu0 %v3008
    %3089 = vmatpush.bf16.msra.mxu0 %v3007
    %3090 = vmatpush.bf16.msra.mxu0 %v3006
    %3091 = vmatpush.bf16.msra.mxu0 %v3005
    %3092 = vmatpush.bf16.msra.mxu0 %v3004
    %3093 = vmatpush.bf16.msra.mxu0 %v3003
    %3094 = vmatpush.bf16.msra.mxu0 %v3002
    %3095 = vmatmul.bf16.gmra.mxu0 %v2750
    %v3096 = vpop.f32.mrf.mxu0
    %v3097 = vadd.f32 %v3084, %v3096
    %v3098 = vpop.f32.mrf.mxu0
    %3099 = vdwg.mxu0
    %3100 = vmatpush.bf16.msra.mxu0 %v3017
    %3101 = vmatpush.bf16.msra.mxu0 %v3016
    %3102 = vmatpush.bf16.msra.mxu0 %v3015
    %3103 = vmatpush.bf16.msra.mxu0 %v3014
    %3104 = vmatpush.bf16.msra.mxu0 %v3013
    %3105 = vmatpush.bf16.msra.mxu0 %v3012
    %3106 = vmatpush.bf16.msra.mxu0 %v3011
    %3107 = vmatpush.bf16.msra.mxu0 %v3010
    %3108 = vmatmul.bf16.gmra.mxu0 %v2751
    %v3109 = vpop.f32.mrf.mxu0
    %v3110 = vadd.f32 %v3097, %v3109
    %v3111 = vpop.f32.mrf.mxu0
    %3112 = vdwg.mxu0
    %3113 = vmatpush.bf16.msra.mxu0 %v3025
    %3114 = vmatpush.bf16.msra.mxu0 %v3024
    %3115 = vmatpush.bf16.msra.mxu0 %v3023
    %3116 = vmatpush.bf16.msra.mxu0 %v3022
    %3117 = vmatpush.bf16.msra.mxu0 %v3021
    %3118 = vmatpush.bf16.msra.mxu0 %v3020
    %3119 = vmatpush.bf16.msra.mxu0 %v3019
    %3120 = vmatpush.bf16.msra.mxu0 %v3018
    %3121 = vmatmul.bf16.gmra.mxu0 %v2752
    %v3122 = vpop.f32.mrf.mxu0
    %v3123 = vadd.f32 %v3110, %v3122
    %v3124 = vpop.f32.mrf.mxu0
    %3125 = vdwg.mxu0
    %3126 = vmatpush.bf16.msra.mxu0 %v3033
    %3127 = vmatpush.bf16.msra.mxu0 %v3032
    %3128 = vmatpush.bf16.msra.mxu0 %v3031
    %3129 = vmatpush.bf16.msra.mxu0 %v3030
    %3130 = vmatpush.bf16.msra.mxu0 %v3029
    %3131 = vmatpush.bf16.msra.mxu0 %v3028
    %3132 = vmatpush.bf16.msra.mxu0 %v3027
    %3133 = vmatpush.bf16.msra.mxu0 %v3026
    %3134 = vmatmul.bf16.gmra.mxu0 %v2753
    %v3135 = vpop.f32.mrf.mxu0
    %v3136 = vadd.f32 %v3123, %v3135
    %v3137 = vpop.f32.mrf.mxu0
    %3138 = vdwg.mxu0
    %v3139 = vmul.f32 %v3136, %v3136
    %v3140 = vpack.c.bf16 %v3139, %v3136
    %v3141 = vld [vmem:[%s7] sm:$0xf]
    %v3142 = vld [vmem:[%s7 + $0x4] sm:$0xf]
    %v3143 = vld [vmem:[%s7 + $0x8] sm:$0x3]
    %v3147 = vunpack.c.l.b16 %v3141
    %v3148 = vunpack.c.l.b16 %v3142
    %v3149 = vunpack.c.l.b16 %v3143
    %v3150 = vpack.c.b16 %v3148, %v3147
    %v3151 = vpack.c.b16 %v3149, %v3149
    %vm3153 = vcmask 162816
    %v3155 = vsel %vm3153, %v3140, 0
    %vm3157 = vcmask 1041408
    %v3159 = vsel %vm3157, %v3151, 0
    %3161 = vmatpush.bf16.msra.mxu0 0
    %3162 = vmatpush.bf16.msra.mxu0 0
    %3163 = vmatpush.bf16.msra.mxu0 0
    %3164 = vmatpush.bf16.msra.mxu0 0
    %3165 = vmatpush.bf16.msra.mxu0 0
    %3166 = vmatpush.bf16.msra.mxu0 0
    %3167 = vmatpush.bf16.msra.mxu0 %v3159
    %3168 = vmatpush.bf16.msra.mxu0 %v3150
    %3169 = vmatmul.bf16.gmra.mxu0 %v3155
    %v3170 = vpop.f32.mrf.mxu0
    %v3171 = vadd.f32 0.0, %v3170
    %v3172 = vpop.f32.mrf.mxu0
    %v3173 = vadd.f32 0.0, %v3172
    %3174 = vdwg.mxu0
    %v3175 = vperm.slane %v64, 5
    %v3176 = vmul.f32 %v3171, %v3175
    %v3177 = vmul.f32 %v3173, %v3175
    %v3178 = vmul.f32 %v3176, %v3176
    %v3179 = vsub.f32 %v3177, %v3178
    %v3180 = vmax.f32 %v3179, 0.0
    %v3181 = vadd.f32 %v3180, 1e-05
    %v3182 = vrsqrt.pop %v3181
    %v3183 = vmul.f32 %v3182, %v3181
    %v3184 = vmul.f32 %v3183, %v3182
    %v3185 = vmul.f32 0.5, %v3184
    %v3186 = vsub.f32 1.5, %v3185
    %v3187 = vmul.f32 %v3182, %v3186
    %vm3188 = vweird.f32 %v3181
    %vm3189 = vweird.f32 %v3182
    %vm3190 = vmor %vm3188, %vm3189
    %v3191 = vsel %vm3190, %v3182, %v3187
    %v3192 = vperm.slane %v64, 3
    %v3193 = vmul.f32 %v3191, %v3192
    %v3194 = vmul.f32 %v3176, %v3193
    %v3195 = vperm.slane %v64, 4
    %v3196 = vsub.f32 %v3195, %v3194
    %v3197 = vpack.c.bf16 %v3196, %v3193
    %v3198 = vld [vmem:[%s8] sm:$0x1]
    %vm3199 = vcmask 15360
    %v3201 = vsel %vm3199, %v3197, 0
    %vm3203 = vcmask 1040384
    %v3205 = vsel %vm3203, %v3198, 0
    %3207 = vmatpush.bf16.msra.mxu0 0
    %3208 = vmatpush.bf16.msra.mxu0 0
    %3209 = vmatpush.bf16.msra.mxu0 0
    %3210 = vmatpush.bf16.msra.mxu0 0
    %3211 = vmatpush.bf16.msra.mxu0 0
    %3212 = vmatpush.bf16.msra.mxu0 0
    %3213 = vmatpush.bf16.msra.mxu0 0
    %3214 = vmatpush.bf16.msra.mxu0 %v3205
    %3215 = vmatmul.bf16.gmra.mxu0 %v3201
    %v3216 = vpop.f32.mrf.mxu0
    %v3217 = vadd.f32 0.0, %v3216
    %v3218 = vpop.f32.mrf.mxu0
    %v3219 = vadd.f32 0.0, %v3218
    %3220 = vdwg.mxu0
    %v3221 = vmul.f32 %v3136, %v3217
    %v3222 = vadd.f32 %v3221, %v3219
    %v3223 = vmul.f32 %v3222, 0.2
    %v3224 = vmax.f32 %v3222, %v3223
    %v3225 = vpack.c.bf16 %v3224, %v3224
    %v3226 = vld [vmem:[%s9] sm:$0xf]
    %v3227 = vld [vmem:[%s9 + $0x4] sm:$0xf]
    %v3228 = vld [vmem:[%s9 + $0x8] sm:$0x3]
    %v3229 = vperm.slane %v64, 6
    %v3233 = vunpack.c.l.b16 %v3226
    %v3234 = vunpack.c.l.b16 %v3227
    %v3235 = vunpack.c.l.b16 %v3228
    %v3236 = vpack.c.b16 %v3234, %v3233
    %v3237 = vpack.c.b16 %v3235, %v3235
    %v3240 = vsel %vm3153, %v3225, 0
    %v3243 = vsel %vm3157, %v3237, 0
    %3245 = vmatpush.bf16.msra.mxu0 0
    %3246 = vmatpush.bf16.msra.mxu0 0
    %3247 = vmatpush.bf16.msra.mxu0 0
    %3248 = vmatpush.bf16.msra.mxu0 0
    %3249 = vmatpush.bf16.msra.mxu0 0
    %3250 = vmatpush.bf16.msra.mxu0 0
    %3251 = vmatpush.bf16.msra.mxu0 %v3243
    %3252 = vmatpush.bf16.msra.mxu0 %v3236
    %3253 = vmatmul.bf16.gmra.mxu0 %v3240
    %v3254 = vpop.f32.mrf.mxu0
    %v3255 = vadd.f32 %v3229, %v3254
    %v3256 = vpop.f32.mrf.mxu0
    %3257 = vdwg.mxu0
    %v3258 = vmul.f32 %v3255, 0.2
    %v3259 = vmax.f32 %v3255, %v3258
    %v3260 = vpack.c.bf16 %v3259, %v3259
    %v3261 = vld [vmem:[%s11] sm:$0xf]
    %v3262 = vld [vmem:[%s11 + $0x4] sm:$0xf]
    %v3263 = vld [vmem:[%s11 + $0x8] sm:$0x3]
    %v3267 = vunpack.c.l.b16 %v3261
    %v3268 = vunpack.c.l.b16 %v3262
    %v3269 = vunpack.c.l.b16 %v3263
    %v3270 = vpack.c.b16 %v3268, %v3267
    %v3271 = vpack.c.b16 %v3269, %v3269
    %v3274 = vsel %vm3153, %v3260, 0
    %v3277 = vsel %vm3157, %v3271, 0
    %3279 = vmatpush.bf16.msra.mxu0 0
    %3280 = vmatpush.bf16.msra.mxu0 0
    %3281 = vmatpush.bf16.msra.mxu0 0
    %3282 = vmatpush.bf16.msra.mxu0 0
    %3283 = vmatpush.bf16.msra.mxu0 0
    %3284 = vmatpush.bf16.msra.mxu0 0
    %3285 = vmatpush.bf16.msra.mxu0 %v3277
    %3286 = vmatpush.bf16.msra.mxu0 %v3270
    %3287 = vmatmul.bf16.gmra.mxu0 %v3274
    %v3288 = vpop.f32.mrf.mxu0
    %v3289 = vadd.f32 %v88, %v3288
    %v3290 = vpop.f32.mrf.mxu0
    %3291 = vdwg.mxu0
    %v3292 = vmul.f32 %v3289, 0.2
    %v3293 = vmax.f32 %v3289, %v3292
    %v3294 = vpack.c.bf16 %v3293, %v3293
    %v3295 = vld [vmem:[%s12] sm:$0xf]
    %v3296 = vld [vmem:[%s12 + $0x4] sm:$0xf]
    %v3297 = vld [vmem:[%s12 + $0x8] sm:$0xf]
    %v3298 = vld [vmem:[%s12 + $0xc] sm:$0xf]
    %v3299 = vld [vmem:[%s12 + $0x10] sm:$0xf]
    %v3300 = vld [vmem:[%s12 + $0x14] sm:$0xf]
    %v3301 = vld [vmem:[%s12 + $0x18] sm:$0x1]
    %v3302 = vperm.slane %v65, 0
    %v3310 = vunpack.c.l.b16 %v3295
    %v3311 = vunpack.c.l.b16 %v3296
    %v3312 = vunpack.c.l.b16 %v3297
    %v3313 = vunpack.c.l.b16 %v3298
    %v3314 = vunpack.c.l.b16 %v3299
    %v3315 = vunpack.c.l.b16 %v3300
    %v3316 = vunpack.c.l.b16 %v3301
    %v3317 = vpack.c.b16 %v3311, %v3310
    %v3318 = vpack.c.b16 %v3313, %v3312
    %v3319 = vpack.c.b16 %v3315, %v3314
    %v3320 = vpack.c.b16 %v3316, %v3316
    %vm3324 = vcmask 408576
    %v3326 = vsel %vm3324, %v3294, 0
    %v3329 = vsel %vm3203, %v3320, 0
    %3331 = vmatpush.bf16.msra.mxu0 0
    %3332 = vmatpush.bf16.msra.mxu0 0
    %3333 = vmatpush.bf16.msra.mxu0 0
    %3334 = vmatpush.bf16.msra.mxu0 0
    %3335 = vmatpush.bf16.msra.mxu0 %v3329
    %3336 = vmatpush.bf16.msra.mxu0 %v3319
    %3337 = vmatpush.bf16.msra.mxu0 %v3318
    %3338 = vmatpush.bf16.msra.mxu0 %v3317
    %3339 = vmatmul.bf16.gmra.mxu0 %v3326
    %v3340 = vpop.f32.mrf.mxu0
    %v3341 = vadd.f32 %v3302, %v3340
    %v3342 = vpop.f32.mrf.mxu0
    %3343 = vdwg.mxu0
    %v3344 = vmul.f32 %v3341, 0.2
    %v3345 = vmax.f32 %v3341, %v3344
    %v3346 = vperm.slane %v65, 1
    %v3347 = vmul.f32 %v3345, %v3346
    %v3348 = vsel %vm3153, %v3347, 0.0
    %3349 = vadd.xlane.f32.xlu0 %v3348
    %v3350 = vpop.xlane.xlu0 %3349
    %v3351 = vperm.slane %v65, 2
    %v3352 = vadd.f32 %v3350, %v3351
    %vm3353 = vcmask 7168
    %3354 = vst.msk [vmem:[%s14] sm:$0xff] %vm3353, %v3352
    // Predicated region
    $region62: #{tpu_custom_call.1} parent=1 // pred_check
      _
    $region63: #{tpu_custom_call.1} parent=1 // pred_check_branch
      %3356 = sbr.rel (0) target = $region65
    $region64: #{tpu_custom_call.1} parent=1 // pred_region
      _
    $region65: #{tpu_custom_call.1} parent=1 // pred_fallthru
      _
    // Predicated region
    $region66: #{tpu_custom_call.1} parent=1 // pred_check
      _
    $region67: #{tpu_custom_call.1} parent=1 // pred_check_branch
      %3358 = sbr.rel (0) target = $region69
    $region68: #{tpu_custom_call.1} parent=1 // pred_region
      _
    $region69: #{tpu_custom_call.1} parent=1 // pred_fallthru
      _
    %3359 = vsyncpa [#allocation3], 1

</llo_original>
